<compile_context>
chip_gen: v7x
topology: tpu7x:2x2x1
jax: 0.10.0
libtpu: 0.0.40
codegen_flags: <defaults>
</compile_context>

<pallas_src>
import functools

import jax
import jax.numpy as jnp
from jax.experimental import pallas as pl
from jax.experimental.pallas import tpu as pltpu

IN_FEATURES = 4
HIDDEN = 64
OUT_FEATURES = 1


def dqn_mlp_kernel(x_ref, w1_ref, b1_ref, w2_ref, b2_ref, w3_ref, b3_ref, o_ref):
    # Shapes per tile (batch on lanes):
    #   x_ref : (4,  TB)    w1: (64, 4)   b1: (64, 1)
    #   h1/h2 : (64, TB)    w2: (64, 64)  b2: (64, 1)
    #   o_ref : (1,  TB)    w3: (64, 1)   b3: (1, 1)
    x = x_ref[...]                                   # (4, TB)  f32
    w1 = w1_ref[...]                                 # (64, 4)

    # Layer 1: Linear(4 -> 64) + ReLU.  K=4 contraction done as 4 broadcast
    # multiply-adds on the VPU; bias folded into the ReLU input (no separate
    # broadcast temp).
    h = w1[:, 0:1] * x[0:1, :]                       # (64, TB)
    for k in range(1, IN_FEATURES):
        h = h + w1[:, k : k + 1] * x[k : k + 1, :]
    h1 = jnp.maximum(h + b1_ref[...], 0.0)           # (64, TB)

    # Layer 2: Linear(64 -> 64) + ReLU on the MXU (lane-dense N = TB),
    # f32 accumulation.
    h2 = jnp.dot(w2_ref[...], h1, preferred_element_type=jnp.float32)
    h2 = jnp.maximum(h2 + b2_ref[...], 0.0)          # (64, TB)

    # Layer 3: Linear(64 -> 1).  Single output feature -> VPU multiply +
    # cross-sublane (XLU) reduce; avoids wasting an MXU pass on M=1.
    out = jnp.sum(h2 * w3_ref[...], axis=0, keepdims=True)   # (1, TB)
    o_ref[...] = out + b3_ref[...]


@functools.partial(jax.jit, static_argnames=("tb",))
def deep_q_network_forward(x, params, *, tb=1024):
    """x: (batch, 4) f32; params in PyTorch-native (out, in) layout.

    Returns (batch, 1) f32, matching DeepQNetwork.forward.
    """
    w1, b1, w2, b2, w3, b3 = params
    batch = x.shape[0]

    # Batch-on-lanes: transpose to (features, batch) and zero-pad the lane
    # (batch) axis to a multiple of TB so every block is lane-dense and obeys
    # the (8, 128) tiling rule.  Padding rows are sliced off at the end.
    num_tiles = pl.cdiv(batch, tb)
    padded = num_tiles * tb
    x_t = jnp.pad(x.astype(jnp.float32).T, ((0, 0), (0, padded - batch)))

    # Layout plumbing for weights/biases (done in the wrapper, not the kernel).
    b1c = b1.reshape(HIDDEN, 1)
    b2c = b2.reshape(HIDDEN, 1)
    w3c = w3.reshape(OUT_FEATURES, HIDDEN).T         # (64, 1)
    b3c = b3.reshape(OUT_FEATURES, 1)                # (1, 1)

    resident = lambda shape: pl.BlockSpec(shape, lambda i: (0, 0))

    flops = padded * 2 * (IN_FEATURES * HIDDEN + HIDDEN * HIDDEN + HIDDEN)
    bytes_accessed = 4 * (
        padded * (IN_FEATURES + OUT_FEATURES)
        + w1.size + b1.size + w2.size + b2.size + w3.size + b3.size
    )

    out_t = pl.pallas_call(
        dqn_mlp_kernel,
        out_shape=jax.ShapeDtypeStruct((OUT_FEATURES, padded), jnp.float32),
        grid=(num_tiles,),
        in_specs=[
            pl.BlockSpec((IN_FEATURES, tb), lambda i: (0, i)),   # x tile
            resident((HIDDEN, IN_FEATURES)),                     # w1
            resident((HIDDEN, 1)),                               # b1
            resident((HIDDEN, HIDDEN)),                          # w2
            resident((HIDDEN, 1)),                               # b2
            resident((HIDDEN, 1)),                               # w3 (column)
            resident((1, 1)),                                    # b3
        ],
        out_specs=pl.BlockSpec((OUT_FEATURES, tb), lambda i: (0, i)),
        compiler_params=pltpu.CompilerParams(
            dimension_semantics=("parallel",),
        ),
        cost_estimate=pl.CostEstimate(
            flops=flops, transcendentals=0, bytes_accessed=bytes_accessed
        ),
    )(x_t, w1, b1c, w2, b2c, w3c, b3c)

    return out_t[:, :batch].T                         # (batch, 1)


def init_params(key):
    # PyTorch-native shapes: Linear(4,64), Linear(64,64), Linear(64,1).
    # Weights ~ U(weights_init_min, weights_init_max) = U(-1, 1);
    # biases ~ U(-1/sqrt(fan_in), 1/sqrt(fan_in)) (PyTorch default).
    k = jax.random.split(key, 6)
    w1 = jax.random.uniform(k[0], (HIDDEN, IN_FEATURES), jnp.float32, -1.0, 1.0)
    b1 = jax.random.uniform(k[1], (HIDDEN,), jnp.float32, -0.5, 0.5)
    w2 = jax.random.uniform(k[2], (HIDDEN, HIDDEN), jnp.float32, -1.0, 1.0)
    b2 = jax.random.uniform(k[3], (HIDDEN,), jnp.float32, -0.125, 0.125)
    w3 = jax.random.uniform(k[4], (OUT_FEATURES, HIDDEN), jnp.float32, -1.0, 1.0)
    b3 = jax.random.uniform(k[5], (OUT_FEATURES,), jnp.float32, -0.125, 0.125)
    return (w1, b1, w2, b2, w3, b3)


def reference_forward(x, params):
    w1, b1, w2, b2, w3, b3 = params
    hi = jax.lax.Precision.HIGHEST
    h1 = jnp.maximum(jnp.dot(x, w1.T, precision=hi) + b1, 0.0)
    h2 = jnp.maximum(jnp.dot(h1, w2.T, precision=hi) + b2, 0.0)
    return jnp.dot(h2, w3.T, precision=hi) + b3


if __name__ == "__main__":
    key = jax.random.PRNGKey(0)
    pkey, xkey1, xkey2 = jax.random.split(key, 3)
    params = init_params(pkey)

    # Small shape consistent with the module (features = 4).
    x_small = jax.random.normal(xkey1, (8, IN_FEATURES), jnp.float32)
    out_small = jax.block_until_ready(deep_q_network_forward(x_small, params))
    ref_small = reference_forward(x_small, params)
    assert out_small.shape == (8, 1), out_small.shape
    assert jnp.allclose(out_small, ref_small, atol=1e-4, rtol=1e-4), "mismatch (batch=8)"

    # Exercise the multi-tile grid + partial-tile padding path.
    x_multi = jax.random.normal(xkey2, (300, IN_FEATURES), jnp.float32)
    out_multi = jax.block_until_ready(deep_q_network_forward(x_multi, params, tb=128))
    ref_multi = reference_forward(x_multi, params)
    assert out_multi.shape == (300, 1), out_multi.shape
    assert jnp.allclose(out_multi, ref_multi, atol=1e-4, rtol=1e-4), "mismatch (batch=300)"

    print("KERNEL_OK")
</pallas_src>

<mosaic_0001>
module attributes {stable_mosaic.version = 11 : i64} {
  func.func @dqn_mlp_kernel(%arg0: i32, %arg1: memref<4x1024xf32, #tpu.memory_space<vmem>>, %arg2: memref<64x4xf32, #tpu.memory_space<vmem>>, %arg3: memref<64x1xf32, #tpu.memory_space<vmem>>, %arg4: memref<64x64xf32, #tpu.memory_space<vmem>>, %arg5: memref<64x1xf32, #tpu.memory_space<vmem>>, %arg6: memref<64x1xf32, #tpu.memory_space<vmem>>, %arg7: memref<1x1xf32, #tpu.memory_space<vmem>>, %arg8: memref<1x1024xf32, #tpu.memory_space<vmem>>) attributes {dimension_semantics = [#tpu.dimension_semantics<parallel>], iteration_bounds = array<i64: 1>, scalar_prefetch = 0 : i64, scratch_operands = 0 : i64, tpu.core_type = #tpu.core_type<tc>, window_params = [{transform_indices = @transform_0, window_bounds = array<i64: 4, 1024>}, {pipeline_mode = #tpu.pipeline_mode<synchronous>, transform_indices = @transform_1, window_bounds = array<i64: 64, 4>}, {pipeline_mode = #tpu.pipeline_mode<synchronous>, transform_indices = @transform_2, window_bounds = array<i64: 64, 1>}, {pipeline_mode = #tpu.pipeline_mode<synchronous>, transform_indices = @transform_3, window_bounds = array<i64: 64, 64>}, {pipeline_mode = #tpu.pipeline_mode<synchronous>, transform_indices = @transform_4, window_bounds = array<i64: 64, 1>}, {pipeline_mode = #tpu.pipeline_mode<synchronous>, transform_indices = @transform_5, window_bounds = array<i64: 64, 1>}, {pipeline_mode = #tpu.pipeline_mode<synchronous>, transform_indices = @transform_6, window_bounds = array<i64: 1, 1>}, {transform_indices = @transform_7, window_bounds = array<i64: 1, 1024>}]} {
    %c0 = arith.constant 0 : index
    %c0_0 = arith.constant 0 : index
    %0 = vector.load %arg1[%c0, %c0_0] : memref<4x1024xf32, #tpu.memory_space<vmem>>, vector<4x1024xf32>
    %c0_1 = arith.constant 0 : index
    %c0_2 = arith.constant 0 : index
    %1 = vector.load %arg2[%c0_1, %c0_2] : memref<64x4xf32, #tpu.memory_space<vmem>>, vector<64x4xf32>
    %2 = vector.extract_strided_slice %1 {offsets = [0, 0], sizes = [64, 1], strides = [1, 1]} : vector<64x4xf32> to vector<64x1xf32>
    %3 = vector.extract_strided_slice %0 {offsets = [0, 0], sizes = [1, 1024], strides = [1, 1]} : vector<4x1024xf32> to vector<1x1024xf32>
    %4 = vector.broadcast %2 : vector<64x1xf32> to vector<64x1024xf32>
    %5 = vector.broadcast %3 : vector<1x1024xf32> to vector<64x1024xf32>
    %6 = arith.mulf %4, %5 : vector<64x1024xf32>
    %7 = vector.extract_strided_slice %1 {offsets = [0, 1], sizes = [64, 1], strides = [1, 1]} : vector<64x4xf32> to vector<64x1xf32>
    %8 = vector.extract_strided_slice %0 {offsets = [1, 0], sizes = [1, 1024], strides = [1, 1]} : vector<4x1024xf32> to vector<1x1024xf32>
    %9 = vector.broadcast %7 : vector<64x1xf32> to vector<64x1024xf32>
    %10 = vector.broadcast %8 : vector<1x1024xf32> to vector<64x1024xf32>
    %11 = arith.mulf %9, %10 : vector<64x1024xf32>
    %12 = arith.addf %6, %11 : vector<64x1024xf32>
    %13 = vector.extract_strided_slice %1 {offsets = [0, 2], sizes = [64, 1], strides = [1, 1]} : vector<64x4xf32> to vector<64x1xf32>
    %14 = vector.extract_strided_slice %0 {offsets = [2, 0], sizes = [1, 1024], strides = [1, 1]} : vector<4x1024xf32> to vector<1x1024xf32>
    %15 = vector.broadcast %13 : vector<64x1xf32> to vector<64x1024xf32>
    %16 = vector.broadcast %14 : vector<1x1024xf32> to vector<64x1024xf32>
    %17 = arith.mulf %15, %16 : vector<64x1024xf32>
    %18 = arith.addf %12, %17 : vector<64x1024xf32>
    %19 = vector.extract_strided_slice %1 {offsets = [0, 3], sizes = [64, 1], strides = [1, 1]} : vector<64x4xf32> to vector<64x1xf32>
    %20 = vector.extract_strided_slice %0 {offsets = [3, 0], sizes = [1, 1024], strides = [1, 1]} : vector<4x1024xf32> to vector<1x1024xf32>
    %21 = vector.broadcast %19 : vector<64x1xf32> to vector<64x1024xf32>
    %22 = vector.broadcast %20 : vector<1x1024xf32> to vector<64x1024xf32>
    %23 = arith.mulf %21, %22 : vector<64x1024xf32>
    %24 = arith.addf %18, %23 : vector<64x1024xf32>
    %c0_3 = arith.constant 0 : index
    %c0_4 = arith.constant 0 : index
    %25 = vector.load %arg3[%c0_3, %c0_4] : memref<64x1xf32, #tpu.memory_space<vmem>>, vector<64x1xf32>
    %26 = vector.broadcast %25 : vector<64x1xf32> to vector<64x1024xf32>
    %27 = arith.addf %24, %26 : vector<64x1024xf32>
    %cst = arith.constant 0.000000e+00 : f32
    %28 = vector.broadcast %cst : f32 to vector<64x1024xf32>
    %29 = arith.maximumf %27, %28 : vector<64x1024xf32>
    %c0_5 = arith.constant 0 : index
    %c0_6 = arith.constant 0 : index
    %30 = vector.load %arg4[%c0_5, %c0_6] : memref<64x64xf32, #tpu.memory_space<vmem>>, vector<64x64xf32>
    %cst_7 = arith.constant dense<0.000000e+00> : vector<64x1024xf32>
    %31 = tpu.matmul %30, %29, %cst_7 {dimension_numbers = #tpu.dot_dimension_numbers<[1], [0], [0], [1], [0, 0, 1, 1], [], []>} : vector<64x64xf32>, vector<64x1024xf32>, vector<64x1024xf32> -> vector<64x1024xf32>
    %c0_8 = arith.constant 0 : index
    %c0_9 = arith.constant 0 : index
    %32 = vector.load %arg5[%c0_8, %c0_9] : memref<64x1xf32, #tpu.memory_space<vmem>>, vector<64x1xf32>
    %33 = vector.broadcast %32 : vector<64x1xf32> to vector<64x1024xf32>
    %34 = arith.addf %31, %33 : vector<64x1024xf32>
    %cst_10 = arith.constant 0.000000e+00 : f32
    %35 = vector.broadcast %cst_10 : f32 to vector<64x1024xf32>
    %36 = arith.maximumf %34, %35 : vector<64x1024xf32>
    %c0_11 = arith.constant 0 : index
    %c0_12 = arith.constant 0 : index
    %37 = vector.load %arg6[%c0_11, %c0_12] : memref<64x1xf32, #tpu.memory_space<vmem>>, vector<64x1xf32>
    %38 = vector.broadcast %37 : vector<64x1xf32> to vector<64x1024xf32>
    %39 = arith.mulf %36, %38 : vector<64x1024xf32>
    %cst_13 = arith.constant dense<0.000000e+00> : vector<1024xf32>
    %40 = vector.multi_reduction <add>, %39, %cst_13 [0] : vector<64x1024xf32> to vector<1024xf32>
    %41 = vector.shape_cast %40 : vector<1024xf32> to vector<1x1024xf32>
    %c0_14 = arith.constant 0 : index
    %c0_15 = arith.constant 0 : index
    %42 = vector.load %arg7[%c0_14, %c0_15] : memref<1x1xf32, #tpu.memory_space<vmem>>, vector<1x1xf32>
    %43 = vector.broadcast %42 : vector<1x1xf32> to vector<1x1024xf32>
    %44 = arith.addf %41, %43 : vector<1x1024xf32>
    %c0_16 = arith.constant 0 : index
    %c0_17 = arith.constant 0 : index
    %45 = vector.load %arg8[%c0_16, %c0_17] : memref<1x1024xf32, #tpu.memory_space<vmem>>, vector<1x1024xf32>
    tpu.vector_store %arg8[%c0_16, %c0_17], %44 {strides = array<i32>} : memref<1x1024xf32, #tpu.memory_space<vmem>>, vector<1x1024xf32>,
    return
  }
  func.func @transform_0(%arg0: i32) -> (i32, i32) {
    %c0_i32 = arith.constant 0 : i32
    %c0_i32_0 = arith.constant 0 : i32
    return %c0_i32, %arg0 : i32, i32
  }
  func.func @transform_1(%arg0: i32) -> (i32, i32) {
    %c0_i32 = arith.constant 0 : i32
    %c0_i32_0 = arith.constant 0 : i32
    %c0_i32_1 = arith.constant 0 : i32
    return %c0_i32, %c0_i32_0 : i32, i32
  }
  func.func @transform_2(%arg0: i32) -> (i32, i32) {
    %c0_i32 = arith.constant 0 : i32
    %c0_i32_0 = arith.constant 0 : i32
    %c0_i32_1 = arith.constant 0 : i32
    return %c0_i32, %c0_i32_0 : i32, i32
  }
  func.func @transform_3(%arg0: i32) -> (i32, i32) {
    %c0_i32 = arith.constant 0 : i32
    %c0_i32_0 = arith.constant 0 : i32
    %c0_i32_1 = arith.constant 0 : i32
    return %c0_i32, %c0_i32_0 : i32, i32
  }
  func.func @transform_4(%arg0: i32) -> (i32, i32) {
    %c0_i32 = arith.constant 0 : i32
    %c0_i32_0 = arith.constant 0 : i32
    %c0_i32_1 = arith.constant 0 : i32
    return %c0_i32, %c0_i32_0 : i32, i32
  }
  func.func @transform_5(%arg0: i32) -> (i32, i32) {
    %c0_i32 = arith.constant 0 : i32
    %c0_i32_0 = arith.constant 0 : i32
    %c0_i32_1 = arith.constant 0 : i32
    return %c0_i32, %c0_i32_0 : i32, i32
  }
  func.func @transform_6(%arg0: i32) -> (i32, i32) {
    %c0_i32 = arith.constant 0 : i32
    %c0_i32_0 = arith.constant 0 : i32
    %c0_i32_1 = arith.constant 0 : i32
    return %c0_i32, %c0_i32_0 : i32, i32
  }
  func.func @transform_7(%arg0: i32) -> (i32, i32) {
    %c0_i32 = arith.constant 0 : i32
    %c0_i32_0 = arith.constant 0 : i32
    return %c0_i32, %arg0 : i32, i32
  }
}

</mosaic_0001>

<llo_original>
// kernel: deep_q_network_forward.1
$region0: #{deep_q_network_forward.1}
  #allocation0 [shape = 'u32[]', space=smem, size = 0x4, offset = 0x4, fixed_abs, tag = 'smem constant byte address 0x4 - core index']
  #allocation1 [shape = 'u32[144,128]{1,0:T(1,128)}', space=vmem, size = 0x12000, scoped, tag = 'internal scratch']
  #allocation2 [shape = 'f32[1,1]{1,0:T(1,128)S(1)}', space=vmem, size = 0x200, scoped, tag = 'scoped memory for deep_q_network_forward.1']
  %s0 = inlined_call_operand.vmem [shape: f32[4,1024], index: 0, kind: input, shape index: {}]
  %s1 = inlined_call_operand.vmem [shape: f32[64,4], index: 1, kind: input, shape index: {}]
  %s2 = inlined_call_operand.vmem [shape: f32[64,1], index: 2, kind: input, shape index: {}]
  %s3 = inlined_call_operand.vmem [shape: f32[64,64], index: 3, kind: input, shape index: {}]
  %s4 = inlined_call_operand.vmem [shape: f32[64,1], index: 4, kind: input, shape index: {}]
  %s5 = inlined_call_operand.vmem [shape: f32[64,1], index: 5, kind: input, shape index: {}]
  %s6 = inlined_call_operand.<no memory space> [shape: f32[1,1], index: 6, kind: input, shape index: {}]
  %s7 = inlined_call_operand.vmem [shape: f32[1,1024], index: 7, kind: output, shape index: {}]
  %s8 = sld [smem:[#allocation0]]
  $region38: #{deep_q_network_forward.1} parent=0
    _
  %s10 = ssub.s32 1, %s8
  %s11 = scalar_select 0, %s10, %s8
  %v12 = vstv %s6
  %13 = vst [vmem:[#allocation2] sm:$0x1] %v12
  // Predicated region
  $region2: #{deep_q_network_forward.1} parent=0 // pred_check
    _
  $region3: #{deep_q_network_forward.1} parent=0 // pred_check_branch
    %15 = sbr.rel (0) target = $region5
  $region4: #{deep_q_network_forward.1} parent=0 // pred_region
    _
  $region5: #{deep_q_network_forward.1} parent=0 // pred_fallthru
    _
  // Predicated region
  $region6: #{deep_q_network_forward.1} parent=0 // pred_check
    _
  $region7: #{deep_q_network_forward.1} parent=0 // pred_check_branch
    %17 = sbr.rel (0) target = $region9
  $region8: #{deep_q_network_forward.1} parent=0 // pred_region
    _
  $region9: #{deep_q_network_forward.1} parent=0 // pred_fallthru
    _
  // Predicated region
  $region10: #{deep_q_network_forward.1} parent=0 // pred_check
    _
  $region11: #{deep_q_network_forward.1} parent=0 // pred_check_branch
    %19 = sbr.rel (0) target = $region13
  $region12: #{deep_q_network_forward.1} parent=0 // pred_region
    _
  $region13: #{deep_q_network_forward.1} parent=0 // pred_fallthru
    _
  // Predicated region
  $region14: #{deep_q_network_forward.1} parent=0 // pred_check
    _
  $region15: #{deep_q_network_forward.1} parent=0 // pred_check_branch
    %21 = sbr.rel (0) target = $region17
  $region16: #{deep_q_network_forward.1} parent=0 // pred_region
    _
  $region17: #{deep_q_network_forward.1} parent=0 // pred_fallthru
    _
  // Predicated region
  $region18: #{deep_q_network_forward.1} parent=0 // pred_check
    _
  $region19: #{deep_q_network_forward.1} parent=0 // pred_check_branch
    %23 = sbr.rel (0) target = $region21
  $region20: #{deep_q_network_forward.1} parent=0 // pred_region
    _
  $region21: #{deep_q_network_forward.1} parent=0 // pred_fallthru
    _
  // Predicated region
  $region22: #{deep_q_network_forward.1} parent=0 // pred_check
    _
  $region23: #{deep_q_network_forward.1} parent=0 // pred_check_branch
    %25 = sbr.rel (0) target = $region25
  $region24: #{deep_q_network_forward.1} parent=0 // pred_region
    _
  $region25: #{deep_q_network_forward.1} parent=0 // pred_fallthru
    _
  // Predicated region
  $region26: #{deep_q_network_forward.1} parent=0 // pred_check
    _
  $region27: #{deep_q_network_forward.1} parent=0 // pred_check_branch
    %27 = sbr.rel (0) target = $region29
  $region28: #{deep_q_network_forward.1} parent=0 // pred_region
    _
  $region29: #{deep_q_network_forward.1} parent=0 // pred_fallthru
    _
  %v28 = vld [vmem:[%s0] sm:$0xff]
  %v29 = vld [vmem:[%s0 + $0x8] sm:$0xff]
  %v30 = vld [vmem:[%s0 + $0x10] sm:$0xff]
  %v31 = vld [vmem:[%s0 + $0x18] sm:$0xff]
  %v32 = vld [vmem:[%s1] sm:$0xff]
  %v33 = vld [vmem:[%s1 + $0x8] sm:$0xff]
  %v34 = vld [vmem:[%s1 + $0x10] sm:$0xff]
  %v35 = vld [vmem:[%s1 + $0x18] sm:$0xff]
  %v36 = vld [vmem:[%s1 + $0x20] sm:$0xff]
  %v37 = vld [vmem:[%s1 + $0x28] sm:$0xff]
  %v38 = vld [vmem:[%s1 + $0x30] sm:$0xff]
  %v39 = vld [vmem:[%s1 + $0x38] sm:$0xff]
  %41 = vset.pattern.permute.xlu0 0
  %42 = vperm.xlu0 %41, %v32
  %v43 = vpop.permute.xlu0 %42
  %46 = vset.pattern.permute.xlu0 0
  %47 = vperm.xlu0 %46, %v33
  %v48 = vpop.permute.xlu0 %47
  %51 = vset.pattern.permute.xlu0 0
  %52 = vperm.xlu0 %51, %v34
  %v53 = vpop.permute.xlu0 %52
  %56 = vset.pattern.permute.xlu0 0
  %57 = vperm.xlu0 %56, %v35
  %v58 = vpop.permute.xlu0 %57
  %61 = vset.pattern.permute.xlu0 0
  %62 = vperm.xlu0 %61, %v36
  %v63 = vpop.permute.xlu0 %62
  %66 = vset.pattern.permute.xlu0 0
  %67 = vperm.xlu0 %66, %v37
  %v68 = vpop.permute.xlu0 %67
  %71 = vset.pattern.permute.xlu0 0
  %72 = vperm.xlu0 %71, %v38
  %v73 = vpop.permute.xlu0 %72
  %76 = vset.pattern.permute.xlu0 0
  %77 = vperm.xlu0 %76, %v39
  %v78 = vpop.permute.xlu0 %77
  %v84 = vlaneseq
  %v85 = vshrl.u32 %v84, 7
  %v86 = vsub.s32 0, %v85
  %v87 = vrot.slane %v28, %v86
  %v88 = vlaneseq
  %v89 = vshrl.u32 %v88, 7
  %v90 = vsub.s32 4, %v89
  %v91 = vrot.slane %v28, %v90
  %v92 = vlaneseq
  %v93 = vshrl.u32 %v92, 7
  %v94 = vsub.s32 0, %v93
  %v95 = vrot.slane %v29, %v94
  %v96 = vlaneseq
  %v97 = vshrl.u32 %v96, 7
  %v98 = vsub.s32 4, %v97
  %v99 = vrot.slane %v29, %v98
  %v100 = vlaneseq
  %v101 = vshrl.u32 %v100, 7
  %v102 = vsub.s32 0, %v101
  %v103 = vrot.slane %v30, %v102
  %v104 = vlaneseq
  %v105 = vshrl.u32 %v104, 7
  %v106 = vsub.s32 4, %v105
  %v107 = vrot.slane %v30, %v106
  %v108 = vlaneseq
  %v109 = vshrl.u32 %v108, 7
  %v110 = vsub.s32 0, %v109
  %v111 = vrot.slane %v31, %v110
  %v112 = vlaneseq
  %v113 = vshrl.u32 %v112, 7
  %v114 = vsub.s32 4, %v113
  %v115 = vrot.slane %v31, %v114
  %v124 = vlaneseq
  %v125 = vshrl.u32 %v124, 7
  %v126 = vsub.s32 0, %v125
  %v127 = vrot.slane %v87, %v126
  %v128 = vlaneseq
  %v129 = vshrl.u32 %v128, 7
  %v130 = vsub.s32 0, %v129
  %v131 = vrot.slane %v91, %v130
  %v132 = vlaneseq
  %v133 = vshrl.u32 %v132, 7
  %v134 = vsub.s32 0, %v133
  %v135 = vrot.slane %v95, %v134
  %v136 = vlaneseq
  %v137 = vshrl.u32 %v136, 7
  %v138 = vsub.s32 0, %v137
  %v139 = vrot.slane %v99, %v138
  %v140 = vlaneseq
  %v141 = vshrl.u32 %v140, 7
  %v142 = vsub.s32 0, %v141
  %v143 = vrot.slane %v103, %v142
  %v144 = vlaneseq
  %v145 = vshrl.u32 %v144, 7
  %v146 = vsub.s32 0, %v145
  %v147 = vrot.slane %v107, %v146
  %v148 = vlaneseq
  %v149 = vshrl.u32 %v148, 7
  %v150 = vsub.s32 0, %v149
  %v151 = vrot.slane %v111, %v150
  %v152 = vlaneseq
  %v153 = vshrl.u32 %v152, 7
  %v154 = vsub.s32 0, %v153
  %v155 = vrot.slane %v115, %v154
  %v156 = vmul.f32 %v43, %v127
  %v157 = vmul.f32 %v43, %v131
  %v158 = vmul.f32 %v43, %v135
  %v159 = vmul.f32 %v43, %v139
  %v160 = vmul.f32 %v43, %v143
  %v161 = vmul.f32 %v43, %v147
  %v162 = vmul.f32 %v43, %v151
  %v163 = vmul.f32 %v43, %v155
  %v164 = vmul.f32 %v48, %v127
  %v165 = vmul.f32 %v48, %v131
  %v166 = vmul.f32 %v48, %v135
  %v167 = vmul.f32 %v48, %v139
  %v168 = vmul.f32 %v48, %v143
  %v169 = vmul.f32 %v48, %v147
  %v170 = vmul.f32 %v48, %v151
  %v171 = vmul.f32 %v48, %v155
  %v172 = vmul.f32 %v53, %v127
  %v173 = vmul.f32 %v53, %v131
  %v174 = vmul.f32 %v53, %v135
  %v175 = vmul.f32 %v53, %v139
  %v176 = vmul.f32 %v53, %v143
  %v177 = vmul.f32 %v53, %v147
  %v178 = vmul.f32 %v53, %v151
  %v179 = vmul.f32 %v53, %v155
  %v180 = vmul.f32 %v58, %v127
  %v181 = vmul.f32 %v58, %v131
  %v182 = vmul.f32 %v58, %v135
  %v183 = vmul.f32 %v58, %v139
  %v184 = vmul.f32 %v58, %v143
  %v185 = vmul.f32 %v58, %v147
  %v186 = vmul.f32 %v58, %v151
  %v187 = vmul.f32 %v58, %v155
  %v188 = vmul.f32 %v63, %v127
  %v189 = vmul.f32 %v63, %v131
  %v190 = vmul.f32 %v63, %v135
  %v191 = vmul.f32 %v63, %v139
  %v192 = vmul.f32 %v63, %v143
  %v193 = vmul.f32 %v63, %v147
  %v194 = vmul.f32 %v63, %v151
  %v195 = vmul.f32 %v63, %v155
  %v196 = vmul.f32 %v68, %v127
  %v197 = vmul.f32 %v68, %v131
  %v198 = vmul.f32 %v68, %v135
  %v199 = vmul.f32 %v68, %v139
  %v200 = vmul.f32 %v68, %v143
  %v201 = vmul.f32 %v68, %v147
  %v202 = vmul.f32 %v68, %v151
  %v203 = vmul.f32 %v68, %v155
  %v204 = vmul.f32 %v73, %v127
  %v205 = vmul.f32 %v73, %v131
  %v206 = vmul.f32 %v73, %v135
  %v207 = vmul.f32 %v73, %v139
  %v208 = vmul.f32 %v73, %v143
  %v209 = vmul.f32 %v73, %v147
  %v210 = vmul.f32 %v73, %v151
  %v211 = vmul.f32 %v73, %v155
  %v212 = vmul.f32 %v78, %v127
  %v213 = vmul.f32 %v78, %v131
  %v214 = vmul.f32 %v78, %v135
  %v215 = vmul.f32 %v78, %v139
  %v216 = vmul.f32 %v78, %v143
  %v217 = vmul.f32 %v78, %v147
  %v218 = vmul.f32 %v78, %v151
  %v219 = vmul.f32 %v78, %v155
  %220 = vset.pattern.permute.xlu0 1
  %221 = vperm.xlu0 %220, %v32
  %v222 = vpop.permute.xlu0 %221
  %224 = vset.pattern.permute.xlu0 1
  %225 = vperm.xlu0 %224, %v33
  %v226 = vpop.permute.xlu0 %225
  %228 = vset.pattern.permute.xlu0 1
  %229 = vperm.xlu0 %228, %v34
  %v230 = vpop.permute.xlu0 %229
  %232 = vset.pattern.permute.xlu0 1
  %233 = vperm.xlu0 %232, %v35
  %v234 = vpop.permute.xlu0 %233
  %236 = vset.pattern.permute.xlu0 1
  %237 = vperm.xlu0 %236, %v36
  %v238 = vpop.permute.xlu0 %237
  %240 = vset.pattern.permute.xlu0 1
  %241 = vperm.xlu0 %240, %v37
  %v242 = vpop.permute.xlu0 %241
  %244 = vset.pattern.permute.xlu0 1
  %245 = vperm.xlu0 %244, %v38
  %v246 = vpop.permute.xlu0 %245
  %248 = vset.pattern.permute.xlu0 1
  %249 = vperm.xlu0 %248, %v39
  %v250 = vpop.permute.xlu0 %249
  %v252 = vlaneseq
  %v253 = vshrl.u32 %v252, 7
  %v254 = vsub.s32 1, %v253
  %v255 = vrot.slane %v28, %v254
  %v256 = vlaneseq
  %v257 = vshrl.u32 %v256, 7
  %v258 = vsub.s32 5, %v257
  %v259 = vrot.slane %v28, %v258
  %v260 = vlaneseq
  %v261 = vshrl.u32 %v260, 7
  %v262 = vsub.s32 1, %v261
  %v263 = vrot.slane %v29, %v262
  %v264 = vlaneseq
  %v265 = vshrl.u32 %v264, 7
  %v266 = vsub.s32 5, %v265
  %v267 = vrot.slane %v29, %v266
  %v268 = vlaneseq
  %v269 = vshrl.u32 %v268, 7
  %v270 = vsub.s32 1, %v269
  %v271 = vrot.slane %v30, %v270
  %v272 = vlaneseq
  %v273 = vshrl.u32 %v272, 7
  %v274 = vsub.s32 5, %v273
  %v275 = vrot.slane %v30, %v274
  %v276 = vlaneseq
  %v277 = vshrl.u32 %v276, 7
  %v278 = vsub.s32 1, %v277
  %v279 = vrot.slane %v31, %v278
  %v280 = vlaneseq
  %v281 = vshrl.u32 %v280, 7
  %v282 = vsub.s32 5, %v281
  %v283 = vrot.slane %v31, %v282
  %v292 = vlaneseq
  %v293 = vshrl.u32 %v292, 7
  %v294 = vsub.s32 1, %v293
  %v295 = vrot.slane %v255, %v294
  %v296 = vlaneseq
  %v297 = vshrl.u32 %v296, 7
  %v298 = vsub.s32 1, %v297
  %v299 = vrot.slane %v259, %v298
  %v300 = vlaneseq
  %v301 = vshrl.u32 %v300, 7
  %v302 = vsub.s32 1, %v301
  %v303 = vrot.slane %v263, %v302
  %v304 = vlaneseq
  %v305 = vshrl.u32 %v304, 7
  %v306 = vsub.s32 1, %v305
  %v307 = vrot.slane %v267, %v306
  %v308 = vlaneseq
  %v309 = vshrl.u32 %v308, 7
  %v310 = vsub.s32 1, %v309
  %v311 = vrot.slane %v271, %v310
  %v312 = vlaneseq
  %v313 = vshrl.u32 %v312, 7
  %v314 = vsub.s32 1, %v313
  %v315 = vrot.slane %v275, %v314
  %v316 = vlaneseq
  %v317 = vshrl.u32 %v316, 7
  %v318 = vsub.s32 1, %v317
  %v319 = vrot.slane %v279, %v318
  %v320 = vlaneseq
  %v321 = vshrl.u32 %v320, 7
  %v322 = vsub.s32 1, %v321
  %v323 = vrot.slane %v283, %v322
  %v324 = vmul.f32 %v222, %v295
  %v325 = vmul.f32 %v222, %v299
  %v326 = vmul.f32 %v222, %v303
  %v327 = vmul.f32 %v222, %v307
  %v328 = vmul.f32 %v222, %v311
  %v329 = vmul.f32 %v222, %v315
  %v330 = vmul.f32 %v222, %v319
  %v331 = vmul.f32 %v222, %v323
  %v332 = vmul.f32 %v226, %v295
  %v333 = vmul.f32 %v226, %v299
  %v334 = vmul.f32 %v226, %v303
  %v335 = vmul.f32 %v226, %v307
  %v336 = vmul.f32 %v226, %v311
  %v337 = vmul.f32 %v226, %v315
  %v338 = vmul.f32 %v226, %v319
  %v339 = vmul.f32 %v226, %v323
  %v340 = vmul.f32 %v230, %v295
  %v341 = vmul.f32 %v230, %v299
  %v342 = vmul.f32 %v230, %v303
  %v343 = vmul.f32 %v230, %v307
  %v344 = vmul.f32 %v230, %v311
  %v345 = vmul.f32 %v230, %v315
  %v346 = vmul.f32 %v230, %v319
  %v347 = vmul.f32 %v230, %v323
  %v348 = vmul.f32 %v234, %v295
  %v349 = vmul.f32 %v234, %v299
  %v350 = vmul.f32 %v234, %v303
  %v351 = vmul.f32 %v234, %v307
  %v352 = vmul.f32 %v234, %v311
  %v353 = vmul.f32 %v234, %v315
  %v354 = vmul.f32 %v234, %v319
  %v355 = vmul.f32 %v234, %v323
  %v356 = vmul.f32 %v238, %v295
  %v357 = vmul.f32 %v238, %v299
  %v358 = vmul.f32 %v238, %v303
  %v359 = vmul.f32 %v238, %v307
  %v360 = vmul.f32 %v238, %v311
  %v361 = vmul.f32 %v238, %v315
  %v362 = vmul.f32 %v238, %v319
  %v363 = vmul.f32 %v238, %v323
  %v364 = vmul.f32 %v242, %v295
  %v365 = vmul.f32 %v242, %v299
  %v366 = vmul.f32 %v242, %v303
  %v367 = vmul.f32 %v242, %v307
  %v368 = vmul.f32 %v242, %v311
  %v369 = vmul.f32 %v242, %v315
  %v370 = vmul.f32 %v242, %v319
  %v371 = vmul.f32 %v242, %v323
  %v372 = vmul.f32 %v246, %v295
  %v373 = vmul.f32 %v246, %v299
  %v374 = vmul.f32 %v246, %v303
  %v375 = vmul.f32 %v246, %v307
  %v376 = vmul.f32 %v246, %v311
  %v377 = vmul.f32 %v246, %v315
  %v378 = vmul.f32 %v246, %v319
  %v379 = vmul.f32 %v246, %v323
  %v380 = vmul.f32 %v250, %v295
  %v381 = vmul.f32 %v250, %v299
  %v382 = vmul.f32 %v250, %v303
  %v383 = vmul.f32 %v250, %v307
  %v384 = vmul.f32 %v250, %v311
  %v385 = vmul.f32 %v250, %v315
  %v386 = vmul.f32 %v250, %v319
  %v387 = vmul.f32 %v250, %v323
  %v388 = vadd.f32 %v156, %v324
  %v389 = vadd.f32 %v157, %v325
  %v390 = vadd.f32 %v158, %v326
  %v391 = vadd.f32 %v159, %v327
  %v392 = vadd.f32 %v160, %v328
  %v393 = vadd.f32 %v161, %v329
  %v394 = vadd.f32 %v162, %v330
  %v395 = vadd.f32 %v163, %v331
  %v396 = vadd.f32 %v164, %v332
  %v397 = vadd.f32 %v165, %v333
  %v398 = vadd.f32 %v166, %v334
  %v399 = vadd.f32 %v167, %v335
  %v400 = vadd.f32 %v168, %v336
  %v401 = vadd.f32 %v169, %v337
  %v402 = vadd.f32 %v170, %v338
  %v403 = vadd.f32 %v171, %v339
  %v404 = vadd.f32 %v172, %v340
  %v405 = vadd.f32 %v173, %v341
  %v406 = vadd.f32 %v174, %v342
  %v407 = vadd.f32 %v175, %v343
  %v408 = vadd.f32 %v176, %v344
  %v409 = vadd.f32 %v177, %v345
  %v410 = vadd.f32 %v178, %v346
  %v411 = vadd.f32 %v179, %v347
  %v412 = vadd.f32 %v180, %v348
  %v413 = vadd.f32 %v181, %v349
  %v414 = vadd.f32 %v182, %v350
  %v415 = vadd.f32 %v183, %v351
  %v416 = vadd.f32 %v184, %v352
  %v417 = vadd.f32 %v185, %v353
  %v418 = vadd.f32 %v186, %v354
  %v419 = vadd.f32 %v187, %v355
  %v420 = vadd.f32 %v188, %v356
  %v421 = vadd.f32 %v189, %v357
  %v422 = vadd.f32 %v190, %v358
  %v423 = vadd.f32 %v191, %v359
  %v424 = vadd.f32 %v192, %v360
  %v425 = vadd.f32 %v193, %v361
  %v426 = vadd.f32 %v194, %v362
  %v427 = vadd.f32 %v195, %v363
  %v428 = vadd.f32 %v196, %v364
  %v429 = vadd.f32 %v197, %v365
  %v430 = vadd.f32 %v198, %v366
  %v431 = vadd.f32 %v199, %v367
  %v432 = vadd.f32 %v200, %v368
  %v433 = vadd.f32 %v201, %v369
  %v434 = vadd.f32 %v202, %v370
  %v435 = vadd.f32 %v203, %v371
  %v436 = vadd.f32 %v204, %v372
  %v437 = vadd.f32 %v205, %v373
  %v438 = vadd.f32 %v206, %v374
  %v439 = vadd.f32 %v207, %v375
  %v440 = vadd.f32 %v208, %v376
  %v441 = vadd.f32 %v209, %v377
  %v442 = vadd.f32 %v210, %v378
  %v443 = vadd.f32 %v211, %v379
  %v444 = vadd.f32 %v212, %v380
  %v445 = vadd.f32 %v213, %v381
  %v446 = vadd.f32 %v214, %v382
  %v447 = vadd.f32 %v215, %v383
  %v448 = vadd.f32 %v216, %v384
  %v449 = vadd.f32 %v217, %v385
  %v450 = vadd.f32 %v218, %v386
  %v451 = vadd.f32 %v219, %v387
  %452 = vset.pattern.permute.xlu0 2
  %453 = vperm.xlu0 %452, %v32
  %v454 = vpop.permute.xlu0 %453
  %456 = vset.pattern.permute.xlu0 2
  %457 = vperm.xlu0 %456, %v33
  %v458 = vpop.permute.xlu0 %457
  %460 = vset.pattern.permute.xlu0 2
  %461 = vperm.xlu0 %460, %v34
  %v462 = vpop.permute.xlu0 %461
  %464 = vset.pattern.permute.xlu0 2
  %465 = vperm.xlu0 %464, %v35
  %v466 = vpop.permute.xlu0 %465
  %468 = vset.pattern.permute.xlu0 2
  %469 = vperm.xlu0 %468, %v36
  %v470 = vpop.permute.xlu0 %469
  %472 = vset.pattern.permute.xlu0 2
  %473 = vperm.xlu0 %472, %v37
  %v474 = vpop.permute.xlu0 %473
  %476 = vset.pattern.permute.xlu0 2
  %477 = vperm.xlu0 %476, %v38
  %v478 = vpop.permute.xlu0 %477
  %480 = vset.pattern.permute.xlu0 2
  %481 = vperm.xlu0 %480, %v39
  %v482 = vpop.permute.xlu0 %481
  %v484 = vlaneseq
  %v485 = vshrl.u32 %v484, 7
  %v486 = vsub.s32 2, %v485
  %v487 = vrot.slane %v28, %v486
  %v488 = vlaneseq
  %v489 = vshrl.u32 %v488, 7
  %v490 = vsub.s32 6, %v489
  %v491 = vrot.slane %v28, %v490
  %v492 = vlaneseq
  %v493 = vshrl.u32 %v492, 7
  %v494 = vsub.s32 2, %v493
  %v495 = vrot.slane %v29, %v494
  %v496 = vlaneseq
  %v497 = vshrl.u32 %v496, 7
  %v498 = vsub.s32 6, %v497
  %v499 = vrot.slane %v29, %v498
  %v500 = vlaneseq
  %v501 = vshrl.u32 %v500, 7
  %v502 = vsub.s32 2, %v501
  %v503 = vrot.slane %v30, %v502
  %v504 = vlaneseq
  %v505 = vshrl.u32 %v504, 7
  %v506 = vsub.s32 6, %v505
  %v507 = vrot.slane %v30, %v506
  %v508 = vlaneseq
  %v509 = vshrl.u32 %v508, 7
  %v510 = vsub.s32 2, %v509
  %v511 = vrot.slane %v31, %v510
  %v512 = vlaneseq
  %v513 = vshrl.u32 %v512, 7
  %v514 = vsub.s32 6, %v513
  %v515 = vrot.slane %v31, %v514
  %v524 = vlaneseq
  %v525 = vshrl.u32 %v524, 7
  %v526 = vsub.s32 2, %v525
  %v527 = vrot.slane %v487, %v526
  %v528 = vlaneseq
  %v529 = vshrl.u32 %v528, 7
  %v530 = vsub.s32 2, %v529
  %v531 = vrot.slane %v491, %v530
  %v532 = vlaneseq
  %v533 = vshrl.u32 %v532, 7
  %v534 = vsub.s32 2, %v533
  %v535 = vrot.slane %v495, %v534
  %v536 = vlaneseq
  %v537 = vshrl.u32 %v536, 7
  %v538 = vsub.s32 2, %v537
  %v539 = vrot.slane %v499, %v538
  %v540 = vlaneseq
  %v541 = vshrl.u32 %v540, 7
  %v542 = vsub.s32 2, %v541
  %v543 = vrot.slane %v503, %v542
  %v544 = vlaneseq
  %v545 = vshrl.u32 %v544, 7
  %v546 = vsub.s32 2, %v545
  %v547 = vrot.slane %v507, %v546
  %v548 = vlaneseq
  %v549 = vshrl.u32 %v548, 7
  %v550 = vsub.s32 2, %v549
  %v551 = vrot.slane %v511, %v550
  %v552 = vlaneseq
  %v553 = vshrl.u32 %v552, 7
  %v554 = vsub.s32 2, %v553
  %v555 = vrot.slane %v515, %v554
  %v556 = vmul.f32 %v454, %v527
  %v557 = vmul.f32 %v454, %v531
  %v558 = vmul.f32 %v454, %v535
  %v559 = vmul.f32 %v454, %v539
  %v560 = vmul.f32 %v454, %v543
  %v561 = vmul.f32 %v454, %v547
  %v562 = vmul.f32 %v454, %v551
  %v563 = vmul.f32 %v454, %v555
  %v564 = vmul.f32 %v458, %v527
  %v565 = vmul.f32 %v458, %v531
  %v566 = vmul.f32 %v458, %v535
  %v567 = vmul.f32 %v458, %v539
  %v568 = vmul.f32 %v458, %v543
  %v569 = vmul.f32 %v458, %v547
  %v570 = vmul.f32 %v458, %v551
  %v571 = vmul.f32 %v458, %v555
  %v572 = vmul.f32 %v462, %v527
  %v573 = vmul.f32 %v462, %v531
  %v574 = vmul.f32 %v462, %v535
  %v575 = vmul.f32 %v462, %v539
  %v576 = vmul.f32 %v462, %v543
  %v577 = vmul.f32 %v462, %v547
  %v578 = vmul.f32 %v462, %v551
  %v579 = vmul.f32 %v462, %v555
  %v580 = vmul.f32 %v466, %v527
  %v581 = vmul.f32 %v466, %v531
  %v582 = vmul.f32 %v466, %v535
  %v583 = vmul.f32 %v466, %v539
  %v584 = vmul.f32 %v466, %v543
  %v585 = vmul.f32 %v466, %v547
  %v586 = vmul.f32 %v466, %v551
  %v587 = vmul.f32 %v466, %v555
  %v588 = vmul.f32 %v470, %v527
  %v589 = vmul.f32 %v470, %v531
  %v590 = vmul.f32 %v470, %v535
  %v591 = vmul.f32 %v470, %v539
  %v592 = vmul.f32 %v470, %v543
  %v593 = vmul.f32 %v470, %v547
  %v594 = vmul.f32 %v470, %v551
  %v595 = vmul.f32 %v470, %v555
  %v596 = vmul.f32 %v474, %v527
  %v597 = vmul.f32 %v474, %v531
  %v598 = vmul.f32 %v474, %v535
  %v599 = vmul.f32 %v474, %v539
  %v600 = vmul.f32 %v474, %v543
  %v601 = vmul.f32 %v474, %v547
  %v602 = vmul.f32 %v474, %v551
  %v603 = vmul.f32 %v474, %v555
  %v604 = vmul.f32 %v478, %v527
  %v605 = vmul.f32 %v478, %v531
  %v606 = vmul.f32 %v478, %v535
  %v607 = vmul.f32 %v478, %v539
  %v608 = vmul.f32 %v478, %v543
  %v609 = vmul.f32 %v478, %v547
  %v610 = vmul.f32 %v478, %v551
  %v611 = vmul.f32 %v478, %v555
  %v612 = vmul.f32 %v482, %v527
  %v613 = vmul.f32 %v482, %v531
  %v614 = vmul.f32 %v482, %v535
  %v615 = vmul.f32 %v482, %v539
  %v616 = vmul.f32 %v482, %v543
  %v617 = vmul.f32 %v482, %v547
  %v618 = vmul.f32 %v482, %v551
  %v619 = vmul.f32 %v482, %v555
  %v620 = vadd.f32 %v388, %v556
  %v621 = vadd.f32 %v389, %v557
  %v622 = vadd.f32 %v390, %v558
  %v623 = vadd.f32 %v391, %v559
  %v624 = vadd.f32 %v392, %v560
  %v625 = vadd.f32 %v393, %v561
  %v626 = vadd.f32 %v394, %v562
  %v627 = vadd.f32 %v395, %v563
  %v628 = vadd.f32 %v396, %v564
  %v629 = vadd.f32 %v397, %v565
  %v630 = vadd.f32 %v398, %v566
  %v631 = vadd.f32 %v399, %v567
  %v632 = vadd.f32 %v400, %v568
  %v633 = vadd.f32 %v401, %v569
  %v634 = vadd.f32 %v402, %v570
  %v635 = vadd.f32 %v403, %v571
  %v636 = vadd.f32 %v404, %v572
  %v637 = vadd.f32 %v405, %v573
  %v638 = vadd.f32 %v406, %v574
  %v639 = vadd.f32 %v407, %v575
  %v640 = vadd.f32 %v408, %v576
  %v641 = vadd.f32 %v409, %v577
  %v642 = vadd.f32 %v410, %v578
  %v643 = vadd.f32 %v411, %v579
  %v644 = vadd.f32 %v412, %v580
  %v645 = vadd.f32 %v413, %v581
  %v646 = vadd.f32 %v414, %v582
  %v647 = vadd.f32 %v415, %v583
  %v648 = vadd.f32 %v416, %v584
  %v649 = vadd.f32 %v417, %v585
  %v650 = vadd.f32 %v418, %v586
  %v651 = vadd.f32 %v419, %v587
  %v652 = vadd.f32 %v420, %v588
  %v653 = vadd.f32 %v421, %v589
  %v654 = vadd.f32 %v422, %v590
  %v655 = vadd.f32 %v423, %v591
  %v656 = vadd.f32 %v424, %v592
  %v657 = vadd.f32 %v425, %v593
  %v658 = vadd.f32 %v426, %v594
  %v659 = vadd.f32 %v427, %v595
  %v660 = vadd.f32 %v428, %v596
  %v661 = vadd.f32 %v429, %v597
  %v662 = vadd.f32 %v430, %v598
  %v663 = vadd.f32 %v431, %v599
  %v664 = vadd.f32 %v432, %v600
  %v665 = vadd.f32 %v433, %v601
  %v666 = vadd.f32 %v434, %v602
  %v667 = vadd.f32 %v435, %v603
  %v668 = vadd.f32 %v436, %v604
  %v669 = vadd.f32 %v437, %v605
  %v670 = vadd.f32 %v438, %v606
  %v671 = vadd.f32 %v439, %v607
  %v672 = vadd.f32 %v440, %v608
  %v673 = vadd.f32 %v441, %v609
  %v674 = vadd.f32 %v442, %v610
  %v675 = vadd.f32 %v443, %v611
  %v676 = vadd.f32 %v444, %v612
  %v677 = vadd.f32 %v445, %v613
  %v678 = vadd.f32 %v446, %v614
  %v679 = vadd.f32 %v447, %v615
  %v680 = vadd.f32 %v448, %v616
  %v681 = vadd.f32 %v449, %v617
  %v682 = vadd.f32 %v450, %v618
  %v683 = vadd.f32 %v451, %v619
  %684 = vset.pattern.permute.xlu0 3
  %685 = vperm.xlu0 %684, %v32
  %v686 = vpop.permute.xlu0 %685
  %688 = vset.pattern.permute.xlu0 3
  %689 = vperm.xlu0 %688, %v33
  %v690 = vpop.permute.xlu0 %689
  %692 = vset.pattern.permute.xlu0 3
  %693 = vperm.xlu0 %692, %v34
  %v694 = vpop.permute.xlu0 %693
  %696 = vset.pattern.permute.xlu0 3
  %697 = vperm.xlu0 %696, %v35
  %v698 = vpop.permute.xlu0 %697
  %700 = vset.pattern.permute.xlu0 3
  %701 = vperm.xlu0 %700, %v36
  %v702 = vpop.permute.xlu0 %701
  %704 = vset.pattern.permute.xlu0 3
  %705 = vperm.xlu0 %704, %v37
  %v706 = vpop.permute.xlu0 %705
  %708 = vset.pattern.permute.xlu0 3
  %709 = vperm.xlu0 %708, %v38
  %v710 = vpop.permute.xlu0 %709
  %712 = vset.pattern.permute.xlu0 3
  %713 = vperm.xlu0 %712, %v39
  %v714 = vpop.permute.xlu0 %713
  %v716 = vlaneseq
  %v717 = vshrl.u32 %v716, 7
  %v718 = vsub.s32 3, %v717
  %v719 = vrot.slane %v28, %v718
  %v720 = vlaneseq
  %v721 = vshrl.u32 %v720, 7
  %v722 = vsub.s32 7, %v721
  %v723 = vrot.slane %v28, %v722
  %v724 = vlaneseq
  %v725 = vshrl.u32 %v724, 7
  %v726 = vsub.s32 3, %v725
  %v727 = vrot.slane %v29, %v726
  %v728 = vlaneseq
  %v729 = vshrl.u32 %v728, 7
  %v730 = vsub.s32 7, %v729
  %v731 = vrot.slane %v29, %v730
  %v732 = vlaneseq
  %v733 = vshrl.u32 %v732, 7
  %v734 = vsub.s32 3, %v733
  %v735 = vrot.slane %v30, %v734
  %v736 = vlaneseq
  %v737 = vshrl.u32 %v736, 7
  %v738 = vsub.s32 7, %v737
  %v739 = vrot.slane %v30, %v738
  %v740 = vlaneseq
  %v741 = vshrl.u32 %v740, 7
  %v742 = vsub.s32 3, %v741
  %v743 = vrot.slane %v31, %v742
  %v744 = vlaneseq
  %v745 = vshrl.u32 %v744, 7
  %v746 = vsub.s32 7, %v745
  %v747 = vrot.slane %v31, %v746
  %v756 = vlaneseq
  %v757 = vshrl.u32 %v756, 7
  %v758 = vsub.s32 3, %v757
  %v759 = vrot.slane %v719, %v758
  %v760 = vlaneseq
  %v761 = vshrl.u32 %v760, 7
  %v762 = vsub.s32 3, %v761
  %v763 = vrot.slane %v723, %v762
  %v764 = vlaneseq
  %v765 = vshrl.u32 %v764, 7
  %v766 = vsub.s32 3, %v765
  %v767 = vrot.slane %v727, %v766
  %v768 = vlaneseq
  %v769 = vshrl.u32 %v768, 7
  %v770 = vsub.s32 3, %v769
  %v771 = vrot.slane %v731, %v770
  %v772 = vlaneseq
  %v773 = vshrl.u32 %v772, 7
  %v774 = vsub.s32 3, %v773
  %v775 = vrot.slane %v735, %v774
  %v776 = vlaneseq
  %v777 = vshrl.u32 %v776, 7
  %v778 = vsub.s32 3, %v777
  %v779 = vrot.slane %v739, %v778
  %v780 = vlaneseq
  %v781 = vshrl.u32 %v780, 7
  %v782 = vsub.s32 3, %v781
  %v783 = vrot.slane %v743, %v782
  %v784 = vlaneseq
  %v785 = vshrl.u32 %v784, 7
  %v786 = vsub.s32 3, %v785
  %v787 = vrot.slane %v747, %v786
  %v788 = vmul.f32 %v686, %v759
  %v789 = vmul.f32 %v686, %v763
  %v790 = vmul.f32 %v686, %v767
  %v791 = vmul.f32 %v686, %v771
  %v792 = vmul.f32 %v686, %v775
  %v793 = vmul.f32 %v686, %v779
  %v794 = vmul.f32 %v686, %v783
  %v795 = vmul.f32 %v686, %v787
  %v796 = vmul.f32 %v690, %v759
  %v797 = vmul.f32 %v690, %v763
  %v798 = vmul.f32 %v690, %v767
  %v799 = vmul.f32 %v690, %v771
  %v800 = vmul.f32 %v690, %v775
  %v801 = vmul.f32 %v690, %v779
  %v802 = vmul.f32 %v690, %v783
  %v803 = vmul.f32 %v690, %v787
  %v804 = vmul.f32 %v694, %v759
  %v805 = vmul.f32 %v694, %v763
  %v806 = vmul.f32 %v694, %v767
  %v807 = vmul.f32 %v694, %v771
  %v808 = vmul.f32 %v694, %v775
  %v809 = vmul.f32 %v694, %v779
  %v810 = vmul.f32 %v694, %v783
  %v811 = vmul.f32 %v694, %v787
  %v812 = vmul.f32 %v698, %v759
  %v813 = vmul.f32 %v698, %v763
  %v814 = vmul.f32 %v698, %v767
  %v815 = vmul.f32 %v698, %v771
  %v816 = vmul.f32 %v698, %v775
  %v817 = vmul.f32 %v698, %v779
  %v818 = vmul.f32 %v698, %v783
  %v819 = vmul.f32 %v698, %v787
  %v820 = vmul.f32 %v702, %v759
  %v821 = vmul.f32 %v702, %v763
  %v822 = vmul.f32 %v702, %v767
  %v823 = vmul.f32 %v702, %v771
  %v824 = vmul.f32 %v702, %v775
  %v825 = vmul.f32 %v702, %v779
  %v826 = vmul.f32 %v702, %v783
  %v827 = vmul.f32 %v702, %v787
  %v828 = vmul.f32 %v706, %v759
  %v829 = vmul.f32 %v706, %v763
  %v830 = vmul.f32 %v706, %v767
  %v831 = vmul.f32 %v706, %v771
  %v832 = vmul.f32 %v706, %v775
  %v833 = vmul.f32 %v706, %v779
  %v834 = vmul.f32 %v706, %v783
  %v835 = vmul.f32 %v706, %v787
  %v836 = vmul.f32 %v710, %v759
  %v837 = vmul.f32 %v710, %v763
  %v838 = vmul.f32 %v710, %v767
  %v839 = vmul.f32 %v710, %v771
  %v840 = vmul.f32 %v710, %v775
  %v841 = vmul.f32 %v710, %v779
  %v842 = vmul.f32 %v710, %v783
  %v843 = vmul.f32 %v710, %v787
  %v844 = vmul.f32 %v714, %v759
  %v845 = vmul.f32 %v714, %v763
  %v846 = vmul.f32 %v714, %v767
  %v847 = vmul.f32 %v714, %v771
  %v848 = vmul.f32 %v714, %v775
  %v849 = vmul.f32 %v714, %v779
  %v850 = vmul.f32 %v714, %v783
  %v851 = vmul.f32 %v714, %v787
  %v852 = vadd.f32 %v620, %v788
  %v853 = vadd.f32 %v621, %v789
  %v854 = vadd.f32 %v622, %v790
  %v855 = vadd.f32 %v623, %v791
  %v856 = vadd.f32 %v624, %v792
  %v857 = vadd.f32 %v625, %v793
  %v858 = vadd.f32 %v626, %v794
  %v859 = vadd.f32 %v627, %v795
  %v860 = vadd.f32 %v628, %v796
  %v861 = vadd.f32 %v629, %v797
  %v862 = vadd.f32 %v630, %v798
  %v863 = vadd.f32 %v631, %v799
  %v864 = vadd.f32 %v632, %v800
  %v865 = vadd.f32 %v633, %v801
  %v866 = vadd.f32 %v634, %v802
  %v867 = vadd.f32 %v635, %v803
  %v868 = vadd.f32 %v636, %v804
  %v869 = vadd.f32 %v637, %v805
  %v870 = vadd.f32 %v638, %v806
  %v871 = vadd.f32 %v639, %v807
  %v872 = vadd.f32 %v640, %v808
  %v873 = vadd.f32 %v641, %v809
  %v874 = vadd.f32 %v642, %v810
  %v875 = vadd.f32 %v643, %v811
  %v876 = vadd.f32 %v644, %v812
  %v877 = vadd.f32 %v645, %v813
  %v878 = vadd.f32 %v646, %v814
  %v879 = vadd.f32 %v647, %v815
  %v880 = vadd.f32 %v648, %v816
  %v881 = vadd.f32 %v649, %v817
  %v882 = vadd.f32 %v650, %v818
  %v883 = vadd.f32 %v651, %v819
  %v884 = vadd.f32 %v652, %v820
  %v885 = vadd.f32 %v653, %v821
  %v886 = vadd.f32 %v654, %v822
  %v887 = vadd.f32 %v655, %v823
  %v888 = vadd.f32 %v656, %v824
  %v889 = vadd.f32 %v657, %v825
  %v890 = vadd.f32 %v658, %v826
  %v891 = vadd.f32 %v659, %v827
  %v892 = vadd.f32 %v660, %v828
  %v893 = vadd.f32 %v661, %v829
  %v894 = vadd.f32 %v662, %v830
  %v895 = vadd.f32 %v663, %v831
  %v896 = vadd.f32 %v664, %v832
  %v897 = vadd.f32 %v665, %v833
  %v898 = vadd.f32 %v666, %v834
  %v899 = vadd.f32 %v667, %v835
  %v900 = vadd.f32 %v668, %v836
  %v901 = vadd.f32 %v669, %v837
  %v902 = vadd.f32 %v670, %v838
  %v903 = vadd.f32 %v671, %v839
  %v904 = vadd.f32 %v672, %v840
  %v905 = vadd.f32 %v673, %v841
  %v906 = vadd.f32 %v674, %v842
  %v907 = vadd.f32 %v675, %v843
  %v908 = vadd.f32 %v676, %v844
  %v909 = vadd.f32 %v677, %v845
  %v910 = vadd.f32 %v678, %v846
  %v911 = vadd.f32 %v679, %v847
  %v912 = vadd.f32 %v680, %v848
  %v913 = vadd.f32 %v681, %v849
  %v914 = vadd.f32 %v682, %v850
  %v915 = vadd.f32 %v683, %v851
  %v916 = vld [vmem:[%s2] sm:$0xff]
  %v917 = vld [vmem:[%s2 + $0x8] sm:$0xff]
  %v918 = vld [vmem:[%s2 + $0x10] sm:$0xff]
  %v919 = vld [vmem:[%s2 + $0x18] sm:$0xff]
  %v920 = vld [vmem:[%s2 + $0x20] sm:$0xff]
  %v921 = vld [vmem:[%s2 + $0x28] sm:$0xff]
  %v922 = vld [vmem:[%s2 + $0x30] sm:$0xff]
  %v923 = vld [vmem:[%s2 + $0x38] sm:$0xff]
  %925 = vset.pattern.permute.xlu0 0
  %926 = vperm.xlu0 %925, %v916
  %v927 = vpop.permute.xlu0 %926
  %930 = vset.pattern.permute.xlu0 0
  %931 = vperm.xlu0 %930, %v917
  %v932 = vpop.permute.xlu0 %931
  %935 = vset.pattern.permute.xlu0 0
  %936 = vperm.xlu0 %935, %v918
  %v937 = vpop.permute.xlu0 %936
  %940 = vset.pattern.permute.xlu0 0
  %941 = vperm.xlu0 %940, %v919
  %v942 = vpop.permute.xlu0 %941
  %945 = vset.pattern.permute.xlu0 0
  %946 = vperm.xlu0 %945, %v920
  %v947 = vpop.permute.xlu0 %946
  %950 = vset.pattern.permute.xlu0 0
  %951 = vperm.xlu0 %950, %v921
  %v952 = vpop.permute.xlu0 %951
  %955 = vset.pattern.permute.xlu0 0
  %956 = vperm.xlu0 %955, %v922
  %v957 = vpop.permute.xlu0 %956
  %960 = vset.pattern.permute.xlu0 0
  %961 = vperm.xlu0 %960, %v923
  %v962 = vpop.permute.xlu0 %961
  %v964 = vadd.f32 %v852, %v927
  %v965 = vadd.f32 %v853, %v927
  %v966 = vadd.f32 %v854, %v927
  %v967 = vadd.f32 %v855, %v927
  %v968 = vadd.f32 %v856, %v927
  %v969 = vadd.f32 %v857, %v927
  %v970 = vadd.f32 %v858, %v927
  %v971 = vadd.f32 %v859, %v927
  %v972 = vadd.f32 %v860, %v932
  %v973 = vadd.f32 %v861, %v932
  %v974 = vadd.f32 %v862, %v932
  %v975 = vadd.f32 %v863, %v932
  %v976 = vadd.f32 %v864, %v932
  %v977 = vadd.f32 %v865, %v932
  %v978 = vadd.f32 %v866, %v932
  %v979 = vadd.f32 %v867, %v932
  %v980 = vadd.f32 %v868, %v937
  %v981 = vadd.f32 %v869, %v937
  %v982 = vadd.f32 %v870, %v937
  %v983 = vadd.f32 %v871, %v937
  %v984 = vadd.f32 %v872, %v937
  %v985 = vadd.f32 %v873, %v937
  %v986 = vadd.f32 %v874, %v937
  %v987 = vadd.f32 %v875, %v937
  %v988 = vadd.f32 %v876, %v942
  %v989 = vadd.f32 %v877, %v942
  %v990 = vadd.f32 %v878, %v942
  %v991 = vadd.f32 %v879, %v942
  %v992 = vadd.f32 %v880, %v942
  %v993 = vadd.f32 %v881, %v942
  %v994 = vadd.f32 %v882, %v942
  %v995 = vadd.f32 %v883, %v942
  %v996 = vadd.f32 %v884, %v947
  %v997 = vadd.f32 %v885, %v947
  %v998 = vadd.f32 %v886, %v947
  %v999 = vadd.f32 %v887, %v947
  %v1000 = vadd.f32 %v888, %v947
  %v1001 = vadd.f32 %v889, %v947
  %v1002 = vadd.f32 %v890, %v947
  %v1003 = vadd.f32 %v891, %v947
  %v1004 = vadd.f32 %v892, %v952
  %v1005 = vadd.f32 %v893, %v952
  %v1006 = vadd.f32 %v894, %v952
  %v1007 = vadd.f32 %v895, %v952
  %v1008 = vadd.f32 %v896, %v952
  %v1009 = vadd.f32 %v897, %v952
  %v1010 = vadd.f32 %v898, %v952
  %v1011 = vadd.f32 %v899, %v952
  %v1012 = vadd.f32 %v900, %v957
  %v1013 = vadd.f32 %v901, %v957
  %v1014 = vadd.f32 %v902, %v957
  %v1015 = vadd.f32 %v903, %v957
  %v1016 = vadd.f32 %v904, %v957
  %v1017 = vadd.f32 %v905, %v957
  %v1018 = vadd.f32 %v906, %v957
  %v1019 = vadd.f32 %v907, %v957
  %v1020 = vadd.f32 %v908, %v962
  %v1021 = vadd.f32 %v909, %v962
  %v1022 = vadd.f32 %v910, %v962
  %v1023 = vadd.f32 %v911, %v962
  %v1024 = vadd.f32 %v912, %v962
  %v1025 = vadd.f32 %v913, %v962
  %v1026 = vadd.f32 %v914, %v962
  %v1027 = vadd.f32 %v915, %v962
  %v1028 = vmax.f32 %v964, 0.0
  %v1029 = vmax.f32 %v965, 0.0
  %v1030 = vmax.f32 %v966, 0.0
  %v1031 = vmax.f32 %v967, 0.0
  %v1032 = vmax.f32 %v968, 0.0
  %v1033 = vmax.f32 %v969, 0.0
  %v1034 = vmax.f32 %v970, 0.0
  %v1035 = vmax.f32 %v971, 0.0
  %v1036 = vmax.f32 %v972, 0.0
  %v1037 = vmax.f32 %v973, 0.0
  %v1038 = vmax.f32 %v974, 0.0
  %v1039 = vmax.f32 %v975, 0.0
  %v1040 = vmax.f32 %v976, 0.0
  %v1041 = vmax.f32 %v977, 0.0
  %v1042 = vmax.f32 %v978, 0.0
  %v1043 = vmax.f32 %v979, 0.0
  %v1044 = vmax.f32 %v980, 0.0
  %v1045 = vmax.f32 %v981, 0.0
  %v1046 = vmax.f32 %v982, 0.0
  %v1047 = vmax.f32 %v983, 0.0
  %v1048 = vmax.f32 %v984, 0.0
  %v1049 = vmax.f32 %v985, 0.0
  %v1050 = vmax.f32 %v986, 0.0
  %v1051 = vmax.f32 %v987, 0.0
  %v1052 = vmax.f32 %v988, 0.0
  %v1053 = vmax.f32 %v989, 0.0
  %v1054 = vmax.f32 %v990, 0.0
  %v1055 = vmax.f32 %v991, 0.0
  %v1056 = vmax.f32 %v992, 0.0
  %v1057 = vmax.f32 %v993, 0.0
  %v1058 = vmax.f32 %v994, 0.0
  %v1059 = vmax.f32 %v995, 0.0
  %v1060 = vmax.f32 %v996, 0.0
  %v1061 = vmax.f32 %v997, 0.0
  %v1062 = vmax.f32 %v998, 0.0
  %v1063 = vmax.f32 %v999, 0.0
  %v1064 = vmax.f32 %v1000, 0.0
  %v1065 = vmax.f32 %v1001, 0.0
  %v1066 = vmax.f32 %v1002, 0.0
  %v1067 = vmax.f32 %v1003, 0.0
  %v1068 = vmax.f32 %v1004, 0.0
  %v1069 = vmax.f32 %v1005, 0.0
  %v1070 = vmax.f32 %v1006, 0.0
  %v1071 = vmax.f32 %v1007, 0.0
  %v1072 = vmax.f32 %v1008, 0.0
  %v1073 = vmax.f32 %v1009, 0.0
  %v1074 = vmax.f32 %v1010, 0.0
  %v1075 = vmax.f32 %v1011, 0.0
  %v1076 = vmax.f32 %v1012, 0.0
  %v1077 = vmax.f32 %v1013, 0.0
  %v1078 = vmax.f32 %v1014, 0.0
  %v1079 = vmax.f32 %v1015, 0.0
  %v1080 = vmax.f32 %v1016, 0.0
  %v1081 = vmax.f32 %v1017, 0.0
  %v1082 = vmax.f32 %v1018, 0.0
  %v1083 = vmax.f32 %v1019, 0.0
  %v1084 = vmax.f32 %v1020, 0.0
  %v1085 = vmax.f32 %v1021, 0.0
  %v1086 = vmax.f32 %v1022, 0.0
  %v1087 = vmax.f32 %v1023, 0.0
  %v1088 = vmax.f32 %v1024, 0.0
  %v1089 = vmax.f32 %v1025, 0.0
  %v1090 = vmax.f32 %v1026, 0.0
  %v1091 = vmax.f32 %v1027, 0.0
  %v1092 = vld [vmem:[%s3] sm:$0xff]
  %v1093 = vld [vmem:[%s3 + $0x8] sm:$0xff]
  %v1094 = vld [vmem:[%s3 + $0x10] sm:$0xff]
  %v1095 = vld [vmem:[%s3 + $0x18] sm:$0xff]
  %v1096 = vld [vmem:[%s3 + $0x20] sm:$0xff]
  %v1097 = vld [vmem:[%s3 + $0x28] sm:$0xff]
  %v1098 = vld [vmem:[%s3 + $0x30] sm:$0xff]
  %v1099 = vld [vmem:[%s3 + $0x38] sm:$0xff]
  %v1100 = vld [vmem:[%s4] sm:$0xff]
  %v1101 = vld [vmem:[%s4 + $0x8] sm:$0xff]
  %v1102 = vld [vmem:[%s4 + $0x10] sm:$0xff]
  %v1103 = vld [vmem:[%s4 + $0x18] sm:$0xff]
  %v1104 = vld [vmem:[%s4 + $0x20] sm:$0xff]
  %v1105 = vld [vmem:[%s4 + $0x28] sm:$0xff]
  %v1106 = vld [vmem:[%s4 + $0x30] sm:$0xff]
  %v1107 = vld [vmem:[%s4 + $0x38] sm:$0xff]
  %1109 = vset.pattern.permute.xlu0 0
  %1110 = vperm.xlu0 %1109, %v1100
  %v1111 = vpop.permute.xlu0 %1110
  %1114 = vset.pattern.permute.xlu0 0
  %1115 = vperm.xlu0 %1114, %v1101
  %v1116 = vpop.permute.xlu0 %1115
  %1119 = vset.pattern.permute.xlu0 0
  %1120 = vperm.xlu0 %1119, %v1102
  %v1121 = vpop.permute.xlu0 %1120
  %1124 = vset.pattern.permute.xlu0 0
  %1125 = vperm.xlu0 %1124, %v1103
  %v1126 = vpop.permute.xlu0 %1125
  %1129 = vset.pattern.permute.xlu0 0
  %1130 = vperm.xlu0 %1129, %v1104
  %v1131 = vpop.permute.xlu0 %1130
  %1134 = vset.pattern.permute.xlu0 0
  %1135 = vperm.xlu0 %1134, %v1105
  %v1136 = vpop.permute.xlu0 %1135
  %1139 = vset.pattern.permute.xlu0 0
  %1140 = vperm.xlu0 %1139, %v1106
  %v1141 = vpop.permute.xlu0 %1140
  %1144 = vset.pattern.permute.xlu0 0
  %1145 = vperm.xlu0 %1144, %v1107
  %v1146 = vpop.permute.xlu0 %1145
  %vm1148 = vcmask 523264
  %v1150 = vsel %vm1148, %v1092, 0
  %v1153 = vsel %vm1148, %v1093, 0
  %v1156 = vsel %vm1148, %v1094, 0
  %v1159 = vsel %vm1148, %v1095, 0
  %v1162 = vsel %vm1148, %v1096, 0
  %v1165 = vsel %vm1148, %v1097, 0
  %v1168 = vsel %vm1148, %v1098, 0
  %v1171 = vsel %vm1148, %v1099, 0
  %1173 = vmatprep.subr.mxu0 %v1029
  %1174 = vmatpush1.msra.mxu0 %v1028
  %1175 = vmatprep.subr.mxu0 %v1037
  %1176 = vmatpush1.msra.mxu0 %v1036
  %1177 = vmatprep.subr.mxu0 %v1045
  %1178 = vmatpush1.msra.mxu0 %v1044
  %1179 = vmatprep.subr.mxu0 %v1053
  %1180 = vmatpush1.msra.mxu0 %v1052
  %1181 = vmatprep.subr.mxu0 %v1061
  %1182 = vmatpush1.msra.mxu0 %v1060
  %1183 = vmatprep.subr.mxu0 %v1069
  %1184 = vmatpush1.msra.mxu0 %v1068
  %1185 = vmatprep.subr.mxu0 %v1077
  %1186 = vmatpush1.msra.mxu0 %v1076
  %1187 = vmatprep.subr.mxu0 %v1085
  %1188 = vmatpush1.msra.mxu0 %v1084
  %1189 = vmatprep.subr.mxu0 0.0
  %1190 = vmatpush1.msra.mxu0 0.0
  %1191 = vmatprep.subr.mxu0 0.0
  %1192 = vmatpush1.msra.mxu0 0.0
  %1193 = vmatprep.subr.mxu0 0.0
  %1194 = vmatpush1.msra.mxu0 0.0
  %1195 = vmatprep.subr.mxu0 0.0
  %1196 = vmatpush1.msra.mxu0 0.0
  %1197 = vmatprep.subr.mxu0 0.0
  %1198 = vmatpush1.msra.mxu0 0.0
  %1199 = vmatprep.subr.mxu0 0.0
  %1200 = vmatpush1.msra.mxu0 0.0
  %1201 = vmatprep.subr.mxu0 0.0
  %1202 = vmatpush1.msra.mxu0 0.0
  %1203 = vmatprep.subr.mxu0 0.0
  %1204 = vmatpush1.msra.mxu0 0.0
  %1205 = vmatprep.subr.mxu0 0.0
  %1206 = vmatpush1.msra.mxu0 0.0
  %1207 = vmatprep.subr.mxu0 0.0
  %1208 = vmatpush1.msra.mxu0 0.0
  %1209 = vmatprep.subr.mxu0 0.0
  %1210 = vmatpush1.msra.mxu0 0.0
  %1211 = vmatprep.subr.mxu0 0.0
  %1212 = vmatpush1.msra.mxu0 0.0
  %1213 = vmatprep.subr.mxu0 0.0
  %1214 = vmatpush1.msra.mxu0 0.0
  %1215 = vmatprep.subr.mxu0 0.0
  %1216 = vmatpush1.msra.mxu0 0.0
  %1217 = vmatprep.subr.mxu0 0.0
  %1218 = vmatpush1.msra.mxu0 0.0
  %1219 = vmatprep.subr.mxu0 0.0
  %1220 = vmatpush1.msra.mxu0 0.0
  %1221 = vmatprep.subr.mxu0 0.0
  %1222 = vmatpush1.msra.mxu0 0.0
  %1223 = vmatprep.subr.mxu0 0.0
  %1224 = vmatpush1.msra.mxu0 0.0
  %1225 = vmatprep.subr.mxu0 0.0
  %1226 = vmatpush1.msra.mxu0 0.0
  %1227 = vmatprep.subr.mxu0 0.0
  %1228 = vmatpush1.msra.mxu0 0.0
  %1229 = vmatprep.subr.mxu0 0.0
  %1230 = vmatpush1.msra.mxu0 0.0
  %1231 = vmatprep.subr.mxu0 0.0
  %1232 = vmatpush1.msra.mxu0 0.0
  %1233 = vmatprep.subr.mxu0 0.0
  %1234 = vmatpush1.msra.mxu0 0.0
  %1235 = vmatprep.subr.mxu0 0.0
  %1236 = vmatpush1.msra.mxu0 0.0
  %1237 = vmatprep.mubr.f32.mxu0 0.0
  %1238 = vmatmul.mubr.f32.gmra.mrb[0].mxu0 %v1150
  %v1239 = vpop.f32.mrb[0].mxu0
  %v1240 = vadd.f32 %v1111, %v1239
  %v1241 = vpop.f32.mrb[0].mxu0
  %v1242 = vadd.f32 %v1111, %v1241
  %1243 = vmatprep.mubr.f32.mxu0 0.0
  %1244 = vmatmul.mubr.f32.gmra.mrb[0].mxu0 %v1153
  %v1245 = vpop.f32.mrb[0].mxu0
  %v1246 = vadd.f32 %v1116, %v1245
  %v1247 = vpop.f32.mrb[0].mxu0
  %v1248 = vadd.f32 %v1116, %v1247
  %1249 = vmatprep.mubr.f32.mxu0 0.0
  %1250 = vmatmul.mubr.f32.gmra.mrb[0].mxu0 %v1156
  %v1251 = vpop.f32.mrb[0].mxu0
  %v1252 = vadd.f32 %v1121, %v1251
  %v1253 = vpop.f32.mrb[0].mxu0
  %v1254 = vadd.f32 %v1121, %v1253
  %1255 = vmatprep.mubr.f32.mxu0 0.0
  %1256 = vmatmul.mubr.f32.gmra.mrb[0].mxu0 %v1159
  %v1257 = vpop.f32.mrb[0].mxu0
  %v1258 = vadd.f32 %v1126, %v1257
  %v1259 = vpop.f32.mrb[0].mxu0
  %v1260 = vadd.f32 %v1126, %v1259
  %1261 = vmatprep.mubr.f32.mxu0 0.0
  %1262 = vmatmul.mubr.f32.gmra.mrb[0].mxu0 %v1162
  %v1263 = vpop.f32.mrb[0].mxu0
  %v1264 = vadd.f32 %v1131, %v1263
  %v1265 = vpop.f32.mrb[0].mxu0
  %v1266 = vadd.f32 %v1131, %v1265
  %1267 = vmatprep.mubr.f32.mxu0 0.0
  %1268 = vmatmul.mubr.f32.gmra.mrb[0].mxu0 %v1165
  %v1269 = vpop.f32.mrb[0].mxu0
  %v1270 = vadd.f32 %v1136, %v1269
  %v1271 = vpop.f32.mrb[0].mxu0
  %v1272 = vadd.f32 %v1136, %v1271
  %1273 = vmatprep.mubr.f32.mxu0 0.0
  %1274 = vmatmul.mubr.f32.gmra.mrb[0].mxu0 %v1168
  %v1275 = vpop.f32.mrb[0].mxu0
  %v1276 = vadd.f32 %v1141, %v1275
  %v1277 = vpop.f32.mrb[0].mxu0
  %v1278 = vadd.f32 %v1141, %v1277
  %1279 = vmatprep.mubr.f32.mxu0 0.0
  %1280 = vmatmul.mubr.f32.gmra.mrb[0].mxu0 %v1171
  %v1281 = vpop.f32.mrb[0].mxu0
  %v1282 = vadd.f32 %v1146, %v1281
  %v1283 = vpop.f32.mrb[0].mxu0
  %v1284 = vadd.f32 %v1146, %v1283
  %1285 = vdwg.mxu0
  %1286 = vmatprep.subr.mxu0 %v1031
  %1287 = vmatpush1.msra.mxu0 %v1030
  %1288 = vmatprep.subr.mxu0 %v1039
  %1289 = vmatpush1.msra.mxu0 %v1038
  %1290 = vmatprep.subr.mxu0 %v1047
  %1291 = vmatpush1.msra.mxu0 %v1046
  %1292 = vmatprep.subr.mxu0 %v1055
  %1293 = vmatpush1.msra.mxu0 %v1054
  %1294 = vmatprep.subr.mxu0 %v1063
  %1295 = vmatpush1.msra.mxu0 %v1062
  %1296 = vmatprep.subr.mxu0 %v1071
  %1297 = vmatpush1.msra.mxu0 %v1070
  %1298 = vmatprep.subr.mxu0 %v1079
  %1299 = vmatpush1.msra.mxu0 %v1078
  %1300 = vmatprep.subr.mxu0 %v1087
  %1301 = vmatpush1.msra.mxu0 %v1086
  %1302 = vmatprep.subr.mxu0 0.0
  %1303 = vmatpush1.msra.mxu0 0.0
  %1304 = vmatprep.subr.mxu0 0.0
  %1305 = vmatpush1.msra.mxu0 0.0
  %1306 = vmatprep.subr.mxu0 0.0
  %1307 = vmatpush1.msra.mxu0 0.0
  %1308 = vmatprep.subr.mxu0 0.0
  %1309 = vmatpush1.msra.mxu0 0.0
  %1310 = vmatprep.subr.mxu0 0.0
  %1311 = vmatpush1.msra.mxu0 0.0
  %1312 = vmatprep.subr.mxu0 0.0
  %1313 = vmatpush1.msra.mxu0 0.0
  %1314 = vmatprep.subr.mxu0 0.0
  %1315 = vmatpush1.msra.mxu0 0.0
  %1316 = vmatprep.subr.mxu0 0.0
  %1317 = vmatpush1.msra.mxu0 0.0
  %1318 = vmatprep.subr.mxu0 0.0
  %1319 = vmatpush1.msra.mxu0 0.0
  %1320 = vmatprep.subr.mxu0 0.0
  %1321 = vmatpush1.msra.mxu0 0.0
  %1322 = vmatprep.subr.mxu0 0.0
  %1323 = vmatpush1.msra.mxu0 0.0
  %1324 = vmatprep.subr.mxu0 0.0
  %1325 = vmatpush1.msra.mxu0 0.0
  %1326 = vmatprep.subr.mxu0 0.0
  %1327 = vmatpush1.msra.mxu0 0.0
  %1328 = vmatprep.subr.mxu0 0.0
  %1329 = vmatpush1.msra.mxu0 0.0
  %1330 = vmatprep.subr.mxu0 0.0
  %1331 = vmatpush1.msra.mxu0 0.0
  %1332 = vmatprep.subr.mxu0 0.0
  %1333 = vmatpush1.msra.mxu0 0.0
  %1334 = vmatprep.subr.mxu0 0.0
  %1335 = vmatpush1.msra.mxu0 0.0
  %1336 = vmatprep.subr.mxu0 0.0
  %1337 = vmatpush1.msra.mxu0 0.0
  %1338 = vmatprep.subr.mxu0 0.0
  %1339 = vmatpush1.msra.mxu0 0.0
  %1340 = vmatprep.subr.mxu0 0.0
  %1341 = vmatpush1.msra.mxu0 0.0
  %1342 = vmatprep.subr.mxu0 0.0
  %1343 = vmatpush1.msra.mxu0 0.0
  %1344 = vmatprep.subr.mxu0 0.0
  %1345 = vmatpush1.msra.mxu0 0.0
  %1346 = vmatprep.subr.mxu0 0.0
  %1347 = vmatpush1.msra.mxu0 0.0
  %1348 = vmatprep.subr.mxu0 0.0
  %1349 = vmatpush1.msra.mxu0 0.0
  %1350 = vmatprep.mubr.f32.mxu0 0.0
  %1351 = vmatmul.mubr.f32.gmra.mrb[0].mxu0 %v1150
  %v1352 = vpop.f32.mrb[0].mxu0
  %v1353 = vadd.f32 %v1111, %v1352
  %v1354 = vpop.f32.mrb[0].mxu0
  %v1355 = vadd.f32 %v1111, %v1354
  %1356 = vmatprep.mubr.f32.mxu0 0.0
  %1357 = vmatmul.mubr.f32.gmra.mrb[0].mxu0 %v1153
  %v1358 = vpop.f32.mrb[0].mxu0
  %v1359 = vadd.f32 %v1116, %v1358
  %v1360 = vpop.f32.mrb[0].mxu0
  %v1361 = vadd.f32 %v1116, %v1360
  %1362 = vmatprep.mubr.f32.mxu0 0.0
  %1363 = vmatmul.mubr.f32.gmra.mrb[0].mxu0 %v1156
  %v1364 = vpop.f32.mrb[0].mxu0
  %v1365 = vadd.f32 %v1121, %v1364
  %v1366 = vpop.f32.mrb[0].mxu0
  %v1367 = vadd.f32 %v1121, %v1366
  %1368 = vmatprep.mubr.f32.mxu0 0.0
  %1369 = vmatmul.mubr.f32.gmra.mrb[0].mxu0 %v1159
  %v1370 = vpop.f32.mrb[0].mxu0
  %v1371 = vadd.f32 %v1126, %v1370
  %v1372 = vpop.f32.mrb[0].mxu0
  %v1373 = vadd.f32 %v1126, %v1372
  %1374 = vmatprep.mubr.f32.mxu0 0.0
  %1375 = vmatmul.mubr.f32.gmra.mrb[0].mxu0 %v1162
  %v1376 = vpop.f32.mrb[0].mxu0
  %v1377 = vadd.f32 %v1131, %v1376
  %v1378 = vpop.f32.mrb[0].mxu0
  %v1379 = vadd.f32 %v1131, %v1378
  %1380 = vmatprep.mubr.f32.mxu0 0.0
  %1381 = vmatmul.mubr.f32.gmra.mrb[0].mxu0 %v1165
  %v1382 = vpop.f32.mrb[0].mxu0
  %v1383 = vadd.f32 %v1136, %v1382
  %v1384 = vpop.f32.mrb[0].mxu0
  %v1385 = vadd.f32 %v1136, %v1384
  %1386 = vmatprep.mubr.f32.mxu0 0.0
  %1387 = vmatmul.mubr.f32.gmra.mrb[0].mxu0 %v1168
  %v1388 = vpop.f32.mrb[0].mxu0
  %v1389 = vadd.f32 %v1141, %v1388
  %v1390 = vpop.f32.mrb[0].mxu0
  %v1391 = vadd.f32 %v1141, %v1390
  %1392 = vmatprep.mubr.f32.mxu0 0.0
  %1393 = vmatmul.mubr.f32.gmra.mrb[0].mxu0 %v1171
  %v1394 = vpop.f32.mrb[0].mxu0
  %v1395 = vadd.f32 %v1146, %v1394
  %v1396 = vpop.f32.mrb[0].mxu0
  %v1397 = vadd.f32 %v1146, %v1396
  %1398 = vdwg.mxu0
  %1399 = vmatprep.subr.mxu0 %v1033
  %1400 = vmatpush1.msra.mxu0 %v1032
  %1401 = vmatprep.subr.mxu0 %v1041
  %1402 = vmatpush1.msra.mxu0 %v1040
  %1403 = vmatprep.subr.mxu0 %v1049
  %1404 = vmatpush1.msra.mxu0 %v1048
  %1405 = vmatprep.subr.mxu0 %v1057
  %1406 = vmatpush1.msra.mxu0 %v1056
  %1407 = vmatprep.subr.mxu0 %v1065
  %1408 = vmatpush1.msra.mxu0 %v1064
  %1409 = vmatprep.subr.mxu0 %v1073
  %1410 = vmatpush1.msra.mxu0 %v1072
  %1411 = vmatprep.subr.mxu0 %v1081
  %1412 = vmatpush1.msra.mxu0 %v1080
  %1413 = vmatprep.subr.mxu0 %v1089
  %1414 = vmatpush1.msra.mxu0 %v1088
  %1415 = vmatprep.subr.mxu0 0.0
  %1416 = vmatpush1.msra.mxu0 0.0
  %1417 = vmatprep.subr.mxu0 0.0
  %1418 = vmatpush1.msra.mxu0 0.0
  %1419 = vmatprep.subr.mxu0 0.0
  %1420 = vmatpush1.msra.mxu0 0.0
  %1421 = vmatprep.subr.mxu0 0.0
  %1422 = vmatpush1.msra.mxu0 0.0
  %1423 = vmatprep.subr.mxu0 0.0
  %1424 = vmatpush1.msra.mxu0 0.0
  %1425 = vmatprep.subr.mxu0 0.0
  %1426 = vmatpush1.msra.mxu0 0.0
  %1427 = vmatprep.subr.mxu0 0.0
  %1428 = vmatpush1.msra.mxu0 0.0
  %1429 = vmatprep.subr.mxu0 0.0
  %1430 = vmatpush1.msra.mxu0 0.0
  %1431 = vmatprep.subr.mxu0 0.0
  %1432 = vmatpush1.msra.mxu0 0.0
  %1433 = vmatprep.subr.mxu0 0.0
  %1434 = vmatpush1.msra.mxu0 0.0
  %1435 = vmatprep.subr.mxu0 0.0
  %1436 = vmatpush1.msra.mxu0 0.0
  %1437 = vmatprep.subr.mxu0 0.0
  %1438 = vmatpush1.msra.mxu0 0.0
  %1439 = vmatprep.subr.mxu0 0.0
  %1440 = vmatpush1.msra.mxu0 0.0
  %1441 = vmatprep.subr.mxu0 0.0
  %1442 = vmatpush1.msra.mxu0 0.0
  %1443 = vmatprep.subr.mxu0 0.0
  %1444 = vmatpush1.msra.mxu0 0.0
  %1445 = vmatprep.subr.mxu0 0.0
  %1446 = vmatpush1.msra.mxu0 0.0
  %1447 = vmatprep.subr.mxu0 0.0
  %1448 = vmatpush1.msra.mxu0 0.0
  %1449 = vmatprep.subr.mxu0 0.0
  %1450 = vmatpush1.msra.mxu0 0.0
  %1451 = vmatprep.subr.mxu0 0.0
  %1452 = vmatpush1.msra.mxu0 0.0
  %1453 = vmatprep.subr.mxu0 0.0
  %1454 = vmatpush1.msra.mxu0 0.0
  %1455 = vmatprep.subr.mxu0 0.0
  %1456 = vmatpush1.msra.mxu0 0.0
  %1457 = vmatprep.subr.mxu0 0.0
  %1458 = vmatpush1.msra.mxu0 0.0
  %1459 = vmatprep.subr.mxu0 0.0
  %1460 = vmatpush1.msra.mxu0 0.0
  %1461 = vmatprep.subr.mxu0 0.0
  %1462 = vmatpush1.msra.mxu0 0.0
  %1463 = vmatprep.mubr.f32.mxu0 0.0
  %1464 = vmatmul.mubr.f32.gmra.mrb[0].mxu0 %v1150
  %v1465 = vpop.f32.mrb[0].mxu0
  %v1466 = vadd.f32 %v1111, %v1465
  %v1467 = vpop.f32.mrb[0].mxu0
  %v1468 = vadd.f32 %v1111, %v1467
  %1469 = vmatprep.mubr.f32.mxu0 0.0
  %1470 = vmatmul.mubr.f32.gmra.mrb[0].mxu0 %v1153
  %v1471 = vpop.f32.mrb[0].mxu0
  %v1472 = vadd.f32 %v1116, %v1471
  %v1473 = vpop.f32.mrb[0].mxu0
  %v1474 = vadd.f32 %v1116, %v1473
  %1475 = vmatprep.mubr.f32.mxu0 0.0
  %1476 = vmatmul.mubr.f32.gmra.mrb[0].mxu0 %v1156
  %v1477 = vpop.f32.mrb[0].mxu0
  %v1478 = vadd.f32 %v1121, %v1477
  %v1479 = vpop.f32.mrb[0].mxu0
  %v1480 = vadd.f32 %v1121, %v1479
  %1481 = vmatprep.mubr.f32.mxu0 0.0
  %1482 = vmatmul.mubr.f32.gmra.mrb[0].mxu0 %v1159
  %v1483 = vpop.f32.mrb[0].mxu0
  %v1484 = vadd.f32 %v1126, %v1483
  %v1485 = vpop.f32.mrb[0].mxu0
  %v1486 = vadd.f32 %v1126, %v1485
  %1487 = vmatprep.mubr.f32.mxu0 0.0
  %1488 = vmatmul.mubr.f32.gmra.mrb[0].mxu0 %v1162
  %v1489 = vpop.f32.mrb[0].mxu0
  %v1490 = vadd.f32 %v1131, %v1489
  %v1491 = vpop.f32.mrb[0].mxu0
  %v1492 = vadd.f32 %v1131, %v1491
  %1493 = vmatprep.mubr.f32.mxu0 0.0
  %1494 = vmatmul.mubr.f32.gmra.mrb[0].mxu0 %v1165
  %v1495 = vpop.f32.mrb[0].mxu0
  %v1496 = vadd.f32 %v1136, %v1495
  %v1497 = vpop.f32.mrb[0].mxu0
  %v1498 = vadd.f32 %v1136, %v1497
  %1499 = vmatprep.mubr.f32.mxu0 0.0
  %1500 = vmatmul.mubr.f32.gmra.mrb[0].mxu0 %v1168
  %v1501 = vpop.f32.mrb[0].mxu0
  %v1502 = vadd.f32 %v1141, %v1501
  %v1503 = vpop.f32.mrb[0].mxu0
  %v1504 = vadd.f32 %v1141, %v1503
  %1505 = vmatprep.mubr.f32.mxu0 0.0
  %1506 = vmatmul.mubr.f32.gmra.mrb[0].mxu0 %v1171
  %v1507 = vpop.f32.mrb[0].mxu0
  %v1508 = vadd.f32 %v1146, %v1507
  %v1509 = vpop.f32.mrb[0].mxu0
  %v1510 = vadd.f32 %v1146, %v1509
  %1511 = vdwg.mxu0
  %1512 = vmatprep.subr.mxu0 %v1035
  %1513 = vmatpush1.msra.mxu0 %v1034
  %1514 = vmatprep.subr.mxu0 %v1043
  %1515 = vmatpush1.msra.mxu0 %v1042
  %1516 = vmatprep.subr.mxu0 %v1051
  %1517 = vmatpush1.msra.mxu0 %v1050
  %1518 = vmatprep.subr.mxu0 %v1059
  %1519 = vmatpush1.msra.mxu0 %v1058
  %1520 = vmatprep.subr.mxu0 %v1067
  %1521 = vmatpush1.msra.mxu0 %v1066
  %1522 = vmatprep.subr.mxu0 %v1075
  %1523 = vmatpush1.msra.mxu0 %v1074
  %1524 = vmatprep.subr.mxu0 %v1083
  %1525 = vmatpush1.msra.mxu0 %v1082
  %1526 = vmatprep.subr.mxu0 %v1091
  %1527 = vmatpush1.msra.mxu0 %v1090
  %1528 = vmatprep.subr.mxu0 0.0
  %1529 = vmatpush1.msra.mxu0 0.0
  %1530 = vmatprep.subr.mxu0 0.0
  %1531 = vmatpush1.msra.mxu0 0.0
  %1532 = vmatprep.subr.mxu0 0.0
  %1533 = vmatpush1.msra.mxu0 0.0
  %1534 = vmatprep.subr.mxu0 0.0
  %1535 = vmatpush1.msra.mxu0 0.0
  %1536 = vmatprep.subr.mxu0 0.0
  %1537 = vmatpush1.msra.mxu0 0.0
  %1538 = vmatprep.subr.mxu0 0.0
  %1539 = vmatpush1.msra.mxu0 0.0
  %1540 = vmatprep.subr.mxu0 0.0
  %1541 = vmatpush1.msra.mxu0 0.0
  %1542 = vmatprep.subr.mxu0 0.0
  %1543 = vmatpush1.msra.mxu0 0.0
  %1544 = vmatprep.subr.mxu0 0.0
  %1545 = vmatpush1.msra.mxu0 0.0
  %1546 = vmatprep.subr.mxu0 0.0
  %1547 = vmatpush1.msra.mxu0 0.0
  %1548 = vmatprep.subr.mxu0 0.0
  %1549 = vmatpush1.msra.mxu0 0.0
  %1550 = vmatprep.subr.mxu0 0.0
  %1551 = vmatpush1.msra.mxu0 0.0
  %1552 = vmatprep.subr.mxu0 0.0
  %1553 = vmatpush1.msra.mxu0 0.0
  %1554 = vmatprep.subr.mxu0 0.0
  %1555 = vmatpush1.msra.mxu0 0.0
  %1556 = vmatprep.subr.mxu0 0.0
  %1557 = vmatpush1.msra.mxu0 0.0
  %1558 = vmatprep.subr.mxu0 0.0
  %1559 = vmatpush1.msra.mxu0 0.0
  %1560 = vmatprep.subr.mxu0 0.0
  %1561 = vmatpush1.msra.mxu0 0.0
  %1562 = vmatprep.subr.mxu0 0.0
  %1563 = vmatpush1.msra.mxu0 0.0
  %1564 = vmatprep.subr.mxu0 0.0
  %1565 = vmatpush1.msra.mxu0 0.0
  %1566 = vmatprep.subr.mxu0 0.0
  %1567 = vmatpush1.msra.mxu0 0.0
  %1568 = vmatprep.subr.mxu0 0.0
  %1569 = vmatpush1.msra.mxu0 0.0
  %1570 = vmatprep.subr.mxu0 0.0
  %1571 = vmatpush1.msra.mxu0 0.0
  %1572 = vmatprep.subr.mxu0 0.0
  %1573 = vmatpush1.msra.mxu0 0.0
  %1574 = vmatprep.subr.mxu0 0.0
  %1575 = vmatpush1.msra.mxu0 0.0
  %1576 = vmatprep.mubr.f32.mxu0 0.0
  %1577 = vmatmul.mubr.f32.gmra.mrb[0].mxu0 %v1150
  %v1578 = vpop.f32.mrb[0].mxu0
  %v1579 = vadd.f32 %v1111, %v1578
  %v1580 = vpop.f32.mrb[0].mxu0
  %v1581 = vadd.f32 %v1111, %v1580
  %1582 = vmatprep.mubr.f32.mxu0 0.0
  %1583 = vmatmul.mubr.f32.gmra.mrb[0].mxu0 %v1153
  %v1584 = vpop.f32.mrb[0].mxu0
  %v1585 = vadd.f32 %v1116, %v1584
  %v1586 = vpop.f32.mrb[0].mxu0
  %v1587 = vadd.f32 %v1116, %v1586
  %1588 = vmatprep.mubr.f32.mxu0 0.0
  %1589 = vmatmul.mubr.f32.gmra.mrb[0].mxu0 %v1156
  %v1590 = vpop.f32.mrb[0].mxu0
  %v1591 = vadd.f32 %v1121, %v1590
  %v1592 = vpop.f32.mrb[0].mxu0
  %v1593 = vadd.f32 %v1121, %v1592
  %1594 = vmatprep.mubr.f32.mxu0 0.0
  %1595 = vmatmul.mubr.f32.gmra.mrb[0].mxu0 %v1159
  %v1596 = vpop.f32.mrb[0].mxu0
  %v1597 = vadd.f32 %v1126, %v1596
  %v1598 = vpop.f32.mrb[0].mxu0
  %v1599 = vadd.f32 %v1126, %v1598
  %1600 = vmatprep.mubr.f32.mxu0 0.0
  %1601 = vmatmul.mubr.f32.gmra.mrb[0].mxu0 %v1162
  %v1602 = vpop.f32.mrb[0].mxu0
  %v1603 = vadd.f32 %v1131, %v1602
  %v1604 = vpop.f32.mrb[0].mxu0
  %v1605 = vadd.f32 %v1131, %v1604
  %1606 = vmatprep.mubr.f32.mxu0 0.0
  %1607 = vmatmul.mubr.f32.gmra.mrb[0].mxu0 %v1165
  %v1608 = vpop.f32.mrb[0].mxu0
  %v1609 = vadd.f32 %v1136, %v1608
  %v1610 = vpop.f32.mrb[0].mxu0
  %v1611 = vadd.f32 %v1136, %v1610
  %1612 = vmatprep.mubr.f32.mxu0 0.0
  %1613 = vmatmul.mubr.f32.gmra.mrb[0].mxu0 %v1168
  %v1614 = vpop.f32.mrb[0].mxu0
  %v1615 = vadd.f32 %v1141, %v1614
  %v1616 = vpop.f32.mrb[0].mxu0
  %v1617 = vadd.f32 %v1141, %v1616
  %1618 = vmatprep.mubr.f32.mxu0 0.0
  %1619 = vmatmul.mubr.f32.gmra.mrb[0].mxu0 %v1171
  %v1620 = vpop.f32.mrb[0].mxu0
  %v1621 = vadd.f32 %v1146, %v1620
  %v1622 = vpop.f32.mrb[0].mxu0
  %v1623 = vadd.f32 %v1146, %v1622
  %1624 = vdwg.mxu0
  %v1625 = vmax.f32 %v1240, 0.0
  %v1626 = vmax.f32 %v1242, 0.0
  %v1627 = vmax.f32 %v1353, 0.0
  %v1628 = vmax.f32 %v1355, 0.0
  %v1629 = vmax.f32 %v1466, 0.0
  %v1630 = vmax.f32 %v1468, 0.0
  %v1631 = vmax.f32 %v1579, 0.0
  %v1632 = vmax.f32 %v1581, 0.0
  %v1633 = vmax.f32 %v1246, 0.0
  %v1634 = vmax.f32 %v1248, 0.0
  %v1635 = vmax.f32 %v1359, 0.0
  %v1636 = vmax.f32 %v1361, 0.0
  %v1637 = vmax.f32 %v1472, 0.0
  %v1638 = vmax.f32 %v1474, 0.0
  %v1639 = vmax.f32 %v1585, 0.0
  %v1640 = vmax.f32 %v1587, 0.0
  %v1641 = vmax.f32 %v1252, 0.0
  %v1642 = vmax.f32 %v1254, 0.0
  %v1643 = vmax.f32 %v1365, 0.0
  %v1644 = vmax.f32 %v1367, 0.0
  %v1645 = vmax.f32 %v1478, 0.0
  %v1646 = vmax.f32 %v1480, 0.0
  %v1647 = vmax.f32 %v1591, 0.0
  %v1648 = vmax.f32 %v1593, 0.0
  %v1649 = vmax.f32 %v1258, 0.0
  %v1650 = vmax.f32 %v1260, 0.0
  %v1651 = vmax.f32 %v1371, 0.0
  %v1652 = vmax.f32 %v1373, 0.0
  %v1653 = vmax.f32 %v1484, 0.0
  %v1654 = vmax.f32 %v1486, 0.0
  %v1655 = vmax.f32 %v1597, 0.0
  %v1656 = vmax.f32 %v1599, 0.0
  %v1657 = vmax.f32 %v1264, 0.0
  %v1658 = vmax.f32 %v1266, 0.0
  %v1659 = vmax.f32 %v1377, 0.0
  %v1660 = vmax.f32 %v1379, 0.0
  %v1661 = vmax.f32 %v1490, 0.0
  %v1662 = vmax.f32 %v1492, 0.0
  %v1663 = vmax.f32 %v1603, 0.0
  %v1664 = vmax.f32 %v1605, 0.0
  %v1665 = vmax.f32 %v1270, 0.0
  %v1666 = vmax.f32 %v1272, 0.0
  %v1667 = vmax.f32 %v1383, 0.0
  %v1668 = vmax.f32 %v1385, 0.0
  %v1669 = vmax.f32 %v1496, 0.0
  %v1670 = vmax.f32 %v1498, 0.0
  %v1671 = vmax.f32 %v1609, 0.0
  %v1672 = vmax.f32 %v1611, 0.0
  %v1673 = vmax.f32 %v1276, 0.0
  %v1674 = vmax.f32 %v1278, 0.0
  %v1675 = vmax.f32 %v1389, 0.0
  %v1676 = vmax.f32 %v1391, 0.0
  %v1677 = vmax.f32 %v1502, 0.0
  %v1678 = vmax.f32 %v1504, 0.0
  %v1679 = vmax.f32 %v1615, 0.0
  %v1680 = vmax.f32 %v1617, 0.0
  %v1681 = vmax.f32 %v1282, 0.0
  %v1682 = vmax.f32 %v1284, 0.0
  %v1683 = vmax.f32 %v1395, 0.0
  %v1684 = vmax.f32 %v1397, 0.0
  %v1685 = vmax.f32 %v1508, 0.0
  %v1686 = vmax.f32 %v1510, 0.0
  %v1687 = vmax.f32 %v1621, 0.0
  %v1688 = vmax.f32 %v1623, 0.0
  %v1689 = vld [vmem:[%s5] sm:$0xff]
  %v1690 = vld [vmem:[%s5 + $0x8] sm:$0xff]
  %v1691 = vld [vmem:[%s5 + $0x10] sm:$0xff]
  %v1692 = vld [vmem:[%s5 + $0x18] sm:$0xff]
  %v1693 = vld [vmem:[%s5 + $0x20] sm:$0xff]
  %v1694 = vld [vmem:[%s5 + $0x28] sm:$0xff]
  %v1695 = vld [vmem:[%s5 + $0x30] sm:$0xff]
  %v1696 = vld [vmem:[%s5 + $0x38] sm:$0xff]
  %1698 = vset.pattern.permute.xlu0 0
  %1699 = vperm.xlu0 %1698, %v1689
  %v1700 = vpop.permute.xlu0 %1699
  %1703 = vset.pattern.permute.xlu0 0
  %1704 = vperm.xlu0 %1703, %v1690
  %v1705 = vpop.permute.xlu0 %1704
  %1708 = vset.pattern.permute.xlu0 0
  %1709 = vperm.xlu0 %1708, %v1691
  %v1710 = vpop.permute.xlu0 %1709
  %1713 = vset.pattern.permute.xlu0 0
  %1714 = vperm.xlu0 %1713, %v1692
  %v1715 = vpop.permute.xlu0 %1714
  %1718 = vset.pattern.permute.xlu0 0
  %1719 = vperm.xlu0 %1718, %v1693
  %v1720 = vpop.permute.xlu0 %1719
  %1723 = vset.pattern.permute.xlu0 0
  %1724 = vperm.xlu0 %1723, %v1694
  %v1725 = vpop.permute.xlu0 %1724
  %1728 = vset.pattern.permute.xlu0 0
  %1729 = vperm.xlu0 %1728, %v1695
  %v1730 = vpop.permute.xlu0 %1729
  %1733 = vset.pattern.permute.xlu0 0
  %1734 = vperm.xlu0 %1733, %v1696
  %v1735 = vpop.permute.xlu0 %1734
  %v1737 = vmul.f32 %v1625, %v1700
  %v1738 = vmul.f32 %v1626, %v1700
  %v1739 = vmul.f32 %v1627, %v1700
  %v1740 = vmul.f32 %v1628, %v1700
  %v1741 = vmul.f32 %v1629, %v1700
  %v1742 = vmul.f32 %v1630, %v1700
  %v1743 = vmul.f32 %v1631, %v1700
  %v1744 = vmul.f32 %v1632, %v1700
  %v1745 = vmul.f32 %v1633, %v1705
  %v1746 = vmul.f32 %v1634, %v1705
  %v1747 = vmul.f32 %v1635, %v1705
  %v1748 = vmul.f32 %v1636, %v1705
  %v1749 = vmul.f32 %v1637, %v1705
  %v1750 = vmul.f32 %v1638, %v1705
  %v1751 = vmul.f32 %v1639, %v1705
  %v1752 = vmul.f32 %v1640, %v1705
  %v1753 = vmul.f32 %v1641, %v1710
  %v1754 = vmul.f32 %v1642, %v1710
  %v1755 = vmul.f32 %v1643, %v1710
  %v1756 = vmul.f32 %v1644, %v1710
  %v1757 = vmul.f32 %v1645, %v1710
  %v1758 = vmul.f32 %v1646, %v1710
  %v1759 = vmul.f32 %v1647, %v1710
  %v1760 = vmul.f32 %v1648, %v1710
  %v1761 = vmul.f32 %v1649, %v1715
  %v1762 = vmul.f32 %v1650, %v1715
  %v1763 = vmul.f32 %v1651, %v1715
  %v1764 = vmul.f32 %v1652, %v1715
  %v1765 = vmul.f32 %v1653, %v1715
  %v1766 = vmul.f32 %v1654, %v1715
  %v1767 = vmul.f32 %v1655, %v1715
  %v1768 = vmul.f32 %v1656, %v1715
  %v1769 = vmul.f32 %v1657, %v1720
  %v1770 = vmul.f32 %v1658, %v1720
  %v1771 = vmul.f32 %v1659, %v1720
  %v1772 = vmul.f32 %v1660, %v1720
  %v1773 = vmul.f32 %v1661, %v1720
  %v1774 = vmul.f32 %v1662, %v1720
  %v1775 = vmul.f32 %v1663, %v1720
  %v1776 = vmul.f32 %v1664, %v1720
  %v1777 = vmul.f32 %v1665, %v1725
  %v1778 = vmul.f32 %v1666, %v1725
  %v1779 = vmul.f32 %v1667, %v1725
  %v1780 = vmul.f32 %v1668, %v1725
  %v1781 = vmul.f32 %v1669, %v1725
  %v1782 = vmul.f32 %v1670, %v1725
  %v1783 = vmul.f32 %v1671, %v1725
  %v1784 = vmul.f32 %v1672, %v1725
  %v1785 = vmul.f32 %v1673, %v1730
  %v1786 = vmul.f32 %v1674, %v1730
  %v1787 = vmul.f32 %v1675, %v1730
  %v1788 = vmul.f32 %v1676, %v1730
  %v1789 = vmul.f32 %v1677, %v1730
  %v1790 = vmul.f32 %v1678, %v1730
  %v1791 = vmul.f32 %v1679, %v1730
  %v1792 = vmul.f32 %v1680, %v1730
  %v1793 = vmul.f32 %v1681, %v1735
  %v1794 = vmul.f32 %v1682, %v1735
  %v1795 = vmul.f32 %v1683, %v1735
  %v1796 = vmul.f32 %v1684, %v1735
  %v1797 = vmul.f32 %v1685, %v1735
  %v1798 = vmul.f32 %v1686, %v1735
  %v1799 = vmul.f32 %v1687, %v1735
  %v1800 = vmul.f32 %v1688, %v1735
  %v1801 = vadd.f32 %v1737, %v1745
  %v1802 = vadd.f32 %v1801, %v1753
  %v1803 = vadd.f32 %v1802, %v1761
  %v1804 = vadd.f32 %v1803, %v1769
  %v1805 = vadd.f32 %v1804, %v1777
  %v1806 = vadd.f32 %v1805, %v1785
  %v1807 = vadd.f32 %v1806, %v1793
  %v1808 = vrot.slane %v1807, 4
  %v1809 = vadd.f32 %v1807, %v1808
  %v1810 = vrot.slane %v1809, 2
  %v1811 = vadd.f32 %v1809, %v1810
  %v1812 = vrot.slane %v1811, 1
  %v1813 = vadd.f32 %v1811, %v1812
  %v1814 = vadd.f32 %v1738, %v1746
  %v1815 = vadd.f32 %v1814, %v1754
  %v1816 = vadd.f32 %v1815, %v1762
  %v1817 = vadd.f32 %v1816, %v1770
  %v1818 = vadd.f32 %v1817, %v1778
  %v1819 = vadd.f32 %v1818, %v1786
  %v1820 = vadd.f32 %v1819, %v1794
  %v1821 = vrot.slane %v1820, 4
  %v1822 = vadd.f32 %v1820, %v1821
  %v1823 = vrot.slane %v1822, 2
  %v1824 = vadd.f32 %v1822, %v1823
  %v1825 = vrot.slane %v1824, 1
  %v1826 = vadd.f32 %v1824, %v1825
  %v1827 = vadd.f32 %v1739, %v1747
  %v1828 = vadd.f32 %v1827, %v1755
  %v1829 = vadd.f32 %v1828, %v1763
  %v1830 = vadd.f32 %v1829, %v1771
  %v1831 = vadd.f32 %v1830, %v1779
  %v1832 = vadd.f32 %v1831, %v1787
  %v1833 = vadd.f32 %v1832, %v1795
  %v1834 = vrot.slane %v1833, 4
  %v1835 = vadd.f32 %v1833, %v1834
  %v1836 = vrot.slane %v1835, 2
  %v1837 = vadd.f32 %v1835, %v1836
  %v1838 = vrot.slane %v1837, 1
  %v1839 = vadd.f32 %v1837, %v1838
  %v1840 = vadd.f32 %v1740, %v1748
  %v1841 = vadd.f32 %v1840, %v1756
  %v1842 = vadd.f32 %v1841, %v1764
  %v1843 = vadd.f32 %v1842, %v1772
  %v1844 = vadd.f32 %v1843, %v1780
  %v1845 = vadd.f32 %v1844, %v1788
  %v1846 = vadd.f32 %v1845, %v1796
  %v1847 = vrot.slane %v1846, 4
  %v1848 = vadd.f32 %v1846, %v1847
  %v1849 = vrot.slane %v1848, 2
  %v1850 = vadd.f32 %v1848, %v1849
  %v1851 = vrot.slane %v1850, 1
  %v1852 = vadd.f32 %v1850, %v1851
  %v1853 = vadd.f32 %v1741, %v1749
  %v1854 = vadd.f32 %v1853, %v1757
  %v1855 = vadd.f32 %v1854, %v1765
  %v1856 = vadd.f32 %v1855, %v1773
  %v1857 = vadd.f32 %v1856, %v1781
  %v1858 = vadd.f32 %v1857, %v1789
  %v1859 = vadd.f32 %v1858, %v1797
  %v1860 = vrot.slane %v1859, 4
  %v1861 = vadd.f32 %v1859, %v1860
  %v1862 = vrot.slane %v1861, 2
  %v1863 = vadd.f32 %v1861, %v1862
  %v1864 = vrot.slane %v1863, 1
  %v1865 = vadd.f32 %v1863, %v1864
  %v1866 = vadd.f32 %v1742, %v1750
  %v1867 = vadd.f32 %v1866, %v1758
  %v1868 = vadd.f32 %v1867, %v1766
  %v1869 = vadd.f32 %v1868, %v1774
  %v1870 = vadd.f32 %v1869, %v1782
  %v1871 = vadd.f32 %v1870, %v1790
  %v1872 = vadd.f32 %v1871, %v1798
  %v1873 = vrot.slane %v1872, 4
  %v1874 = vadd.f32 %v1872, %v1873
  %v1875 = vrot.slane %v1874, 2
  %v1876 = vadd.f32 %v1874, %v1875
  %v1877 = vrot.slane %v1876, 1
  %v1878 = vadd.f32 %v1876, %v1877
  %v1879 = vadd.f32 %v1743, %v1751
  %v1880 = vadd.f32 %v1879, %v1759
  %v1881 = vadd.f32 %v1880, %v1767
  %v1882 = vadd.f32 %v1881, %v1775
  %v1883 = vadd.f32 %v1882, %v1783
  %v1884 = vadd.f32 %v1883, %v1791
  %v1885 = vadd.f32 %v1884, %v1799
  %v1886 = vrot.slane %v1885, 4
  %v1887 = vadd.f32 %v1885, %v1886
  %v1888 = vrot.slane %v1887, 2
  %v1889 = vadd.f32 %v1887, %v1888
  %v1890 = vrot.slane %v1889, 1
  %v1891 = vadd.f32 %v1889, %v1890
  %v1892 = vadd.f32 %v1744, %v1752
  %v1893 = vadd.f32 %v1892, %v1760
  %v1894 = vadd.f32 %v1893, %v1768
  %v1895 = vadd.f32 %v1894, %v1776
  %v1896 = vadd.f32 %v1895, %v1784
  %v1897 = vadd.f32 %v1896, %v1792
  %v1898 = vadd.f32 %v1897, %v1800
  %v1899 = vrot.slane %v1898, 4
  %v1900 = vadd.f32 %v1898, %v1899
  %v1901 = vrot.slane %v1900, 2
  %v1902 = vadd.f32 %v1900, %v1901
  %v1903 = vrot.slane %v1902, 1
  %v1904 = vadd.f32 %v1902, %v1903
  %v1905 = vld [vmem:[#allocation2] sm:$0x1]
  %1907 = vset.pattern.permute.xlu0 0
  %1908 = vperm.xlu0 %1907, %v1905
  %v1909 = vpop.permute.xlu0 %1908
  %v1911 = vlaneseq
  %v1912 = vshrl.u32 %v1911, 7
  %v1913 = vsub.s32 0, %v1912
  %v1914 = vrot.slane %v1909, %v1913
  %v1915 = vadd.f32 %v1813, %v1914
  %v1916 = vadd.f32 %v1826, %v1914
  %v1917 = vadd.f32 %v1839, %v1914
  %v1918 = vadd.f32 %v1852, %v1914
  %v1919 = vadd.f32 %v1865, %v1914
  %v1920 = vadd.f32 %v1878, %v1914
  %v1921 = vadd.f32 %v1891, %v1914
  %v1922 = vadd.f32 %v1904, %v1914
  %v1931 = vcombine.low %v1915, %v1916
  %v1932 = vcombine.low %v1917, %v1918
  %v1933 = vcombine.low %v1919, %v1920
  %v1934 = vcombine.low %v1921, %v1922
  %v1936 = vunpack.c.l.s4 1966171168
  %v1937 = vunpack.c.0.s8 %v1936
  %v1938 = vlaneseq
  %v1939 = vshrl.u32 %v1938, 7
  %v1940 = vsub.s32 %v1937, %v1939
  %v1941 = vrot.slane %v1931, %v1940
  %v1943 = vunpack.c.l.s4 1966171168
  %v1944 = vunpack.c.0.s8 %v1943
  %v1945 = vlaneseq
  %v1946 = vshrl.u32 %v1945, 7
  %v1947 = vsub.s32 %v1944, %v1946
  %v1948 = vrot.slane %v1932, %v1947
  %v1950 = vunpack.c.l.s4 1966171168
  %v1951 = vunpack.c.0.s8 %v1950
  %v1952 = vlaneseq
  %v1953 = vshrl.u32 %v1952, 7
  %v1954 = vsub.s32 %v1951, %v1953
  %v1955 = vrot.slane %v1933, %v1954
  %v1957 = vunpack.c.l.s4 1966171168
  %v1958 = vunpack.c.0.s8 %v1957
  %v1959 = vlaneseq
  %v1960 = vshrl.u32 %v1959, 7
  %v1961 = vsub.s32 %v1958, %v1960
  %v1962 = vrot.slane %v1934, %v1961
  %v1963 = vcombine.low %v1941, %v1948
  %v1964 = vcombine.low %v1955, %v1962
  %v1966 = vunpack.c.l.s4 1966171168
  %v1967 = vunpack.c.0.s8 %v1966
  %v1968 = vlaneseq
  %v1969 = vshrl.u32 %v1968, 7
  %v1970 = vsub.s32 %v1967, %v1969
  %v1971 = vrot.slane %v1963, %v1970
  %v1973 = vunpack.c.l.s4 1966171168
  %v1974 = vunpack.c.0.s8 %v1973
  %v1975 = vlaneseq
  %v1976 = vshrl.u32 %v1975, 7
  %v1977 = vsub.s32 %v1974, %v1976
  %v1978 = vrot.slane %v1964, %v1977
  %v1979 = vcombine.low %v1971, %v1978
  %1981 = vst [vmem:[%s7] sm:$0xff] %v1979
  // Predicated region
  $region30: #{deep_q_network_forward.1} parent=0 // pred_check
    _
  $region31: #{deep_q_network_forward.1} parent=0 // pred_check_branch
    %1983 = sbr.rel (0) target = $region33
  $region32: #{deep_q_network_forward.1} parent=0 // pred_region
    _
  $region33: #{deep_q_network_forward.1} parent=0 // pred_fallthru
    _
  // Predicated region
  $region34: #{deep_q_network_forward.1} parent=0 // pred_check
    _
  $region35: #{deep_q_network_forward.1} parent=0 // pred_check_branch
    %1985 = sbr.rel (0) target = $region37
  $region36: #{deep_q_network_forward.1} parent=0 // pred_region
    _
  $region37: #{deep_q_network_forward.1} parent=0 // pred_fallthru
    _

</llo_original>
